<compile_context>
chip_gen: v6e
topology: v6e:2x2x1
jax: 0.10.0
libtpu: 0.0.40
codegen_flags: <defaults>
</compile_context>

<pallas_src>
import jax
import jax.numpy as jnp
from jax.experimental import pallas as pl
from jax.experimental.pallas import tpu as pltpu


HEADS = 4
LANE = 128          # per-head lane block width (padded) and output lane width
NEG_INF = -1e30     # additive mask sentinel (masking path stays in f32)


# ----------------------------------------------------------------------------
# Fused two-layer GAT kernel (single invocation, everything VMEM-resident)
# ----------------------------------------------------------------------------
def make_gat_fused_kernel(n_nodes, heads, blk):
    """blk: per-head lane-block width (128) of the packed weights."""

    def gat_layer(feat, adj_bias, w_all, a_dst_mat, a_src_rows, bias):
        # feat: (N, F_in); w_all: (F_in, H*blk)  (heads concatenated along lanes)
        xw = jnp.dot(feat, w_all, preferred_element_type=jnp.float32)       # (N, H*blk)
        # attention coefficients for ALL heads with two small matmuls:
        #   adst[:, h] = <xw_h[i], a_dst_h>  (column per head, dst orientation)
        #   asrc[h, :] = <xw_h[j], a_src_h>  (row per head, src orientation)
        adst = jnp.dot(xw, a_dst_mat, preferred_element_type=jnp.float32)   # (N, H)
        asrc = jnp.einsum('hk,nk->hn', a_src_rows, xw,
                          preferred_element_type=jnp.float32)               # (H, N)
        heads_f = jnp.float32(heads)
        acc = jnp.zeros((n_nodes, blk), jnp.float32)
        for h in range(heads):                                 # static unroll (H=4)
            e = adst[:, h:h + 1] + asrc[h:h + 1, :]            # (N_dst, N_src)
            e = jnp.where(e > 0.0, e, 0.2 * e) + adj_bias      # LeakyReLU(0.2) + mask
            m = jnp.max(e, axis=-1, keepdims=True)
            p = jnp.exp(e - m)
            # fold the 1/heads mean into the softmax denominator; EUP reciprocal
            denom = jnp.sum(p, axis=-1, keepdims=True) * heads_f
            attn = p * pl.reciprocal(denom, approx=True)
            acc = acc + jnp.dot(attn, xw[:, h * blk:(h + 1) * blk],
                                preferred_element_type=jnp.float32)
        return acc + bias

    def kernel(x_ref, adj_ref, w1_ref, a1d_ref, a1s_ref, b1_ref,
               w2_ref, a2d_ref, a2s_ref, b2_ref, o_ref):
        # additive adjacency bias computed once, reused by both layers
        adj_bias = jnp.where(adj_ref[...] > 0.0, 0.0, NEG_INF)
        # layer 1 + fused ELU (stays in VMEM/vregs; padded lanes stay exactly 0)
        h1 = gat_layer(x_ref[...], adj_bias, w1_ref[...], a1d_ref[...],
                       a1s_ref[...], b1_ref[...])
        h1 = jnp.where(h1 > 0.0, h1, jnp.exp(h1) - 1.0)
        # layer 2 (input dim padded to 128, per-head blocks padded to 128 lanes)
        out = gat_layer(h1, adj_bias, w2_ref[...], a2d_ref[...],
                        a2s_ref[...], b2_ref[...])
        o_ref[...] = out                                       # unmasked (N, 128) store

    return kernel


# ----------------------------------------------------------------------------
# Host-side parameter packing
# ----------------------------------------------------------------------------
def pack_gatconv_params(W, a_src, a_dst, bias, in_pad, blk):
    """W:(H,F_in,F_out)  a_*:(H,1,F_out)  bias:(1,F_out).  in_pad>=F_in, blk>=F_out.

    Returns:
      W_all      : (in_pad, H*blk)  head h occupies lanes [h*blk, h*blk+F_out)
      A_dst_mat  : (H*blk, H)       block-diagonal a_dst   (xw @ A_dst -> (N, H))
      A_src_rows : (H, H*blk)       block rows of a_src    ('hk,nk->hn' -> (H, N))
      b_pad      : (1, blk)
    """
    H, F_in, F_out = W.shape
    assert in_pad >= F_in and blk >= F_out
    W_all = jnp.zeros((in_pad, H * blk), jnp.float32)
    A_dst = jnp.zeros((H * blk, H), jnp.float32)
    A_src = jnp.zeros((H, H * blk), jnp.float32)
    for h in range(H):
        W_all = W_all.at[:F_in, h * blk:h * blk + F_out].set(W[h])
        A_dst = A_dst.at[h * blk:h * blk + F_out, h].set(a_dst[h, 0])
        A_src = A_src.at[h, h * blk:h * blk + F_out].set(a_src[h, 0])
    b_pad = jnp.zeros((1, blk), jnp.float32).at[:, :F_out].set(bias)
    return W_all, A_dst, A_src, b_pad


def gat_forward(x, adj, params):
    N = x.shape[0]
    heads, in_feats, h_feats = params["W1"].shape
    out_feats = params["W2"].shape[2]

    # layer 1: real input dim; layer 2: input dim padded to LANE (h1 is lane-padded)
    w1, a1d, a1s, b1 = pack_gatconv_params(
        params["W1"], params["a_src1"], params["a_dst1"], params["b1"], in_feats, LANE)
    w2, a2d, a2s, b2 = pack_gatconv_params(
        params["W2"], params["a_src2"], params["a_dst2"], params["b2"], LANE, LANE)

    kernel = make_gat_fused_kernel(N, heads, LANE)
    vmem = pl.BlockSpec(memory_space=pltpu.MemorySpace.VMEM)
    out_pad = pl.pallas_call(
        kernel,
        out_shape=jax.ShapeDtypeStruct((N, LANE), jnp.float32),
        in_specs=[vmem] * 10,
        out_specs=vmem,
    )(x, adj.astype(jnp.float32), w1, a1d, a1s, b1, w2, a2d, a2s, b2)
    return out_pad[:, :out_feats]


# ----------------------------------------------------------------------------
# Pure-JAX reference (same dense-mask math) for validation
# ----------------------------------------------------------------------------
def gatconv_ref(x, W, a_src, a_dst, bias, adj):
    heads = W.shape[0]
    xw = jnp.einsum('nf,hfo->hno', x, W)                        # (H, N, F_out)
    asrc = jnp.einsum('hno,ho->hn', xw, a_src.reshape(heads, -1))
    adst = jnp.einsum('hno,ho->hn', xw, a_dst.reshape(heads, -1))
    e = adst[:, :, None] + asrc[:, None, :]                     # (H, dst, src)
    e = jnp.where(e > 0, e, 0.2 * e)
    e = jnp.where(adj[None] > 0, e, NEG_INF)
    attn = jax.nn.softmax(e, axis=-1)
    out = jnp.einsum('hij,hjo->hio', attn, xw)
    return out.mean(axis=0) + bias


def gat_ref(x, adj, p):
    h = gatconv_ref(x, p["W1"], p["a_src1"], p["a_dst1"], p["b1"], adj)
    h = jnp.where(h > 0, h, jnp.exp(h) - 1.0)                   # ELU
    return gatconv_ref(h, p["W2"], p["a_src2"], p["a_dst2"], p["b2"], adj)


# ----------------------------------------------------------------------------
if __name__ == "__main__":
    N, E = 16, 40
    in_feats, h_feats, out_feats, heads = 8, 16, 8, 4

    key = jax.random.PRNGKey(0)
    keys = jax.random.split(key, 10)

    # deterministic synthetic parameters (GATConv shapes from __init__)
    params = {
        "W1":     0.2 * jax.random.normal(keys[0], (heads, in_feats, h_feats), jnp.float32),
        "a_src1": 0.2 * jax.random.normal(keys[1], (heads, 1, h_feats), jnp.float32),
        "a_dst1": 0.2 * jax.random.normal(keys[2], (heads, 1, h_feats), jnp.float32),
        "b1":     0.1 * jax.random.normal(keys[3], (1, h_feats), jnp.float32),
        "W2":     0.2 * jax.random.normal(keys[4], (heads, h_feats, out_feats), jnp.float32),
        "a_src2": 0.2 * jax.random.normal(keys[5], (heads, 1, out_feats), jnp.float32),
        "a_dst2": 0.2 * jax.random.normal(keys[6], (heads, 1, out_feats), jnp.float32),
        "b2":     0.1 * jax.random.normal(keys[7], (1, out_feats), jnp.float32),
    }

    # node features and a random edge_index [2, E] (row 0 = src, row 1 = dst)
    x = jax.random.normal(keys[8], (N, in_feats), jnp.float32)
    edge_index = jax.random.randint(keys[9], (2, E), 0, N)

    # dense adjacency mask adj[dst, src] (+ self-loops, like add_self_loops=True)
    # TODO(synk): duplicate edges in edge_index are deduplicated by the dense mask.
    adj = jnp.zeros((N, N), jnp.float32)
    adj = adj.at[edge_index[1], edge_index[0]].set(1.0)
    adj = adj.at[jnp.arange(N), jnp.arange(N)].set(1.0)

    out = jax.block_until_ready(gat_forward(x, adj, params))
    ref = jax.block_until_ready(gat_ref(x, adj, params))

    assert out.shape == (N, out_feats), out.shape
    # tolerance accounts for the approx (EUP) reciprocal in the softmax/mean
    max_err = jnp.max(jnp.abs(out - ref))
    assert jnp.allclose(out, ref, atol=2e-3, rtol=2e-3), f"max err {max_err}"
    print("KERNEL_OK")
</pallas_src>

<mosaic_0001>
module attributes {stable_mosaic.version = 11 : i64} {
  func.func @kernel(%arg0: memref<16x8xf32, #tpu.memory_space<vmem>>, %arg1: memref<16x16xf32, #tpu.memory_space<vmem>>, %arg2: memref<8x512xf32, #tpu.memory_space<vmem>>, %arg3: memref<512x4xf32, #tpu.memory_space<vmem>>, %arg4: memref<4x512xf32, #tpu.memory_space<vmem>>, %arg5: memref<1x128xf32, #tpu.memory_space<vmem>>, %arg6: memref<128x512xf32, #tpu.memory_space<vmem>>, %arg7: memref<512x4xf32, #tpu.memory_space<vmem>>, %arg8: memref<4x512xf32, #tpu.memory_space<vmem>>, %arg9: memref<1x128xf32, #tpu.memory_space<vmem>>, %arg10: memref<16x128xf32, #tpu.memory_space<vmem>>) attributes {dimension_semantics = [], scalar_prefetch = 0 : i64, scratch_operands = 0 : i64, tpu.core_type = #tpu.core_type<tc>} {
    %c0 = arith.constant 0 : index
    %c0_0 = arith.constant 0 : index
    %0 = vector.load %arg1[%c0, %c0_0] : memref<16x16xf32, #tpu.memory_space<vmem>>, vector<16x16xf32>
    %cst = arith.constant 0.000000e+00 : f32
    %1 = vector.broadcast %cst : f32 to vector<16x16xf32>
    %2 = arith.cmpf ogt, %0, %1 : vector<16x16xf32>
    %cst_1 = arith.constant 0.000000e+00 : f32
    %cst_2 = arith.constant -1.000000e+30 : f32
    %3 = vector.broadcast %cst_1 : f32 to vector<16x16xf32>
    %4 = vector.broadcast %cst_2 : f32 to vector<16x16xf32>
    %5 = arith.select %2, %3, %4 : vector<16x16xi1>, vector<16x16xf32>
    %c0_3 = arith.constant 0 : index
    %c0_4 = arith.constant 0 : index
    %6 = vector.load %arg0[%c0_3, %c0_4] : memref<16x8xf32, #tpu.memory_space<vmem>>, vector<16x8xf32>
    %c0_5 = arith.constant 0 : index
    %c0_6 = arith.constant 0 : index
    %7 = vector.load %arg2[%c0_5, %c0_6] : memref<8x512xf32, #tpu.memory_space<vmem>>, vector<8x512xf32>
    %c0_7 = arith.constant 0 : index
    %c0_8 = arith.constant 0 : index
    %8 = vector.load %arg3[%c0_7, %c0_8] : memref<512x4xf32, #tpu.memory_space<vmem>>, vector<512x4xf32>
    %c0_9 = arith.constant 0 : index
    %c0_10 = arith.constant 0 : index
    %9 = vector.load %arg4[%c0_9, %c0_10] : memref<4x512xf32, #tpu.memory_space<vmem>>, vector<4x512xf32>
    %c0_11 = arith.constant 0 : index
    %c0_12 = arith.constant 0 : index
    %10 = vector.load %arg5[%c0_11, %c0_12] : memref<1x128xf32, #tpu.memory_space<vmem>>, vector<1x128xf32>
    %cst_13 = arith.constant dense<0.000000e+00> : vector<16x512xf32>
    %11 = tpu.matmul %6, %7, %cst_13 {dimension_numbers = #tpu.dot_dimension_numbers<[1], [0], [0], [1], [0, 0, 1, 1], [], []>} : vector<16x8xf32>, vector<8x512xf32>, vector<16x512xf32> -> vector<16x512xf32>
    %cst_14 = arith.constant dense<0.000000e+00> : vector<16x4xf32>
    %12 = tpu.matmul %11, %8, %cst_14 {dimension_numbers = #tpu.dot_dimension_numbers<[1], [0], [0], [1], [0, 0, 1, 1], [], []>} : vector<16x512xf32>, vector<512x4xf32>, vector<16x4xf32> -> vector<16x4xf32>
    "tpu.trace_start"() <{level = 10 : i32, message = "hk,nk->hn"}> : () -> ()
    %cst_15 = arith.constant dense<0.000000e+00> : vector<4x16xf32>
    %13 = tpu.matmul %9, %11, %cst_15 {dimension_numbers = #tpu.dot_dimension_numbers<[1], [1], [0], [0], [0, 0, 1, 0], [], []>} : vector<4x512xf32>, vector<16x512xf32>, vector<4x16xf32> -> vector<4x16xf32>
    %cst_16 = arith.constant 0.000000e+00 : f32
    "tpu.trace_stop"() : () -> ()
    %14 = vector.broadcast %cst_16 : f32 to vector<16x128xf32>
    %15 = vector.extract_strided_slice %12 {offsets = [0, 0], sizes = [16, 1], strides = [1, 1]} : vector<16x4xf32> to vector<16x1xf32>
    %16 = vector.extract_strided_slice %13 {offsets = [0, 0], sizes = [1, 16], strides = [1, 1]} : vector<4x16xf32> to vector<1x16xf32>
    %17 = vector.broadcast %15 : vector<16x1xf32> to vector<16x16xf32>
    %18 = vector.broadcast %16 : vector<1x16xf32> to vector<16x16xf32>
    %19 = arith.addf %17, %18 : vector<16x16xf32>
    %cst_17 = arith.constant 0.000000e+00 : f32
    %20 = vector.broadcast %cst_17 : f32 to vector<16x16xf32>
    %21 = arith.cmpf ogt, %19, %20 : vector<16x16xf32>
    %cst_18 = arith.constant 2.000000e-01 : f32
    %22 = vector.broadcast %cst_18 : f32 to vector<16x16xf32>
    %23 = arith.mulf %22, %19 : vector<16x16xf32>
    %24 = arith.select %21, %19, %23 : vector<16x16xi1>, vector<16x16xf32>
    %25 = arith.addf %24, %5 : vector<16x16xf32>
    %cst_19 = arith.constant dense<0xFF800000> : vector<16xf32>
    %26 = vector.multi_reduction <maximumf>, %25, %cst_19 [1] : vector<16x16xf32> to vector<16xf32>
    %27 = vector.shape_cast %26 : vector<16xf32> to vector<16x1xf32>
    %28 = vector.broadcast %27 : vector<16x1xf32> to vector<16x16xf32>
    %29 = arith.subf %25, %28 : vector<16x16xf32>
    %30 = math.exp %29 : vector<16x16xf32>
    %cst_20 = arith.constant dense<0.000000e+00> : vector<16xf32>
    %31 = vector.multi_reduction <add>, %30, %cst_20 [1] : vector<16x16xf32> to vector<16xf32>
    %32 = vector.shape_cast %31 : vector<16xf32> to vector<16x1xf32>
    %cst_21 = arith.constant 4.000000e+00 : f32
    %33 = vector.broadcast %cst_21 : f32 to vector<16x1xf32>
    %34 = arith.mulf %32, %33 : vector<16x1xf32>
    %35 = tpu.reciprocal %34 {approx = true} : vector<16x1xf32> -> vector<16x1xf32>
    %36 = vector.broadcast %35 : vector<16x1xf32> to vector<16x16xf32>
    %37 = arith.mulf %30, %36 : vector<16x16xf32>
    %38 = vector.extract_strided_slice %11 {offsets = [0, 0], sizes = [16, 128], strides = [1, 1]} : vector<16x512xf32> to vector<16x128xf32>
    %cst_22 = arith.constant dense<0.000000e+00> : vector<16x128xf32>
    %39 = tpu.matmul %37, %38, %cst_22 {dimension_numbers = #tpu.dot_dimension_numbers<[1], [0], [0], [1], [0, 0, 1, 1], [], []>} : vector<16x16xf32>, vector<16x128xf32>, vector<16x128xf32> -> vector<16x128xf32>
    %40 = arith.addf %14, %39 : vector<16x128xf32>
    %41 = vector.extract_strided_slice %12 {offsets = [0, 1], sizes = [16, 1], strides = [1, 1]} : vector<16x4xf32> to vector<16x1xf32>
    %42 = vector.extract_strided_slice %13 {offsets = [1, 0], sizes = [1, 16], strides = [1, 1]} : vector<4x16xf32> to vector<1x16xf32>
    %43 = vector.broadcast %41 : vector<16x1xf32> to vector<16x16xf32>
    %44 = vector.broadcast %42 : vector<1x16xf32> to vector<16x16xf32>
    %45 = arith.addf %43, %44 : vector<16x16xf32>
    %cst_23 = arith.constant 0.000000e+00 : f32
    %46 = vector.broadcast %cst_23 : f32 to vector<16x16xf32>
    %47 = arith.cmpf ogt, %45, %46 : vector<16x16xf32>
    %cst_24 = arith.constant 2.000000e-01 : f32
    %48 = vector.broadcast %cst_24 : f32 to vector<16x16xf32>
    %49 = arith.mulf %48, %45 : vector<16x16xf32>
    %50 = arith.select %47, %45, %49 : vector<16x16xi1>, vector<16x16xf32>
    %51 = arith.addf %50, %5 : vector<16x16xf32>
    %cst_25 = arith.constant dense<0xFF800000> : vector<16xf32>
    %52 = vector.multi_reduction <maximumf>, %51, %cst_25 [1] : vector<16x16xf32> to vector<16xf32>
    %53 = vector.shape_cast %52 : vector<16xf32> to vector<16x1xf32>
    %54 = vector.broadcast %53 : vector<16x1xf32> to vector<16x16xf32>
    %55 = arith.subf %51, %54 : vector<16x16xf32>
    %56 = math.exp %55 : vector<16x16xf32>
    %cst_26 = arith.constant dense<0.000000e+00> : vector<16xf32>
    %57 = vector.multi_reduction <add>, %56, %cst_26 [1] : vector<16x16xf32> to vector<16xf32>
    %58 = vector.shape_cast %57 : vector<16xf32> to vector<16x1xf32>
    %cst_27 = arith.constant 4.000000e+00 : f32
    %59 = vector.broadcast %cst_27 : f32 to vector<16x1xf32>
    %60 = arith.mulf %58, %59 : vector<16x1xf32>
    %61 = tpu.reciprocal %60 {approx = true} : vector<16x1xf32> -> vector<16x1xf32>
    %62 = vector.broadcast %61 : vector<16x1xf32> to vector<16x16xf32>
    %63 = arith.mulf %56, %62 : vector<16x16xf32>
    %64 = vector.extract_strided_slice %11 {offsets = [0, 128], sizes = [16, 128], strides = [1, 1]} : vector<16x512xf32> to vector<16x128xf32>
    %cst_28 = arith.constant dense<0.000000e+00> : vector<16x128xf32>
    %65 = tpu.matmul %63, %64, %cst_28 {dimension_numbers = #tpu.dot_dimension_numbers<[1], [0], [0], [1], [0, 0, 1, 1], [], []>} : vector<16x16xf32>, vector<16x128xf32>, vector<16x128xf32> -> vector<16x128xf32>
    %66 = arith.addf %40, %65 : vector<16x128xf32>
    %67 = vector.extract_strided_slice %12 {offsets = [0, 2], sizes = [16, 1], strides = [1, 1]} : vector<16x4xf32> to vector<16x1xf32>
    %68 = vector.extract_strided_slice %13 {offsets = [2, 0], sizes = [1, 16], strides = [1, 1]} : vector<4x16xf32> to vector<1x16xf32>
    %69 = vector.broadcast %67 : vector<16x1xf32> to vector<16x16xf32>
    %70 = vector.broadcast %68 : vector<1x16xf32> to vector<16x16xf32>
    %71 = arith.addf %69, %70 : vector<16x16xf32>
    %cst_29 = arith.constant 0.000000e+00 : f32
    %72 = vector.broadcast %cst_29 : f32 to vector<16x16xf32>
    %73 = arith.cmpf ogt, %71, %72 : vector<16x16xf32>
    %cst_30 = arith.constant 2.000000e-01 : f32
    %74 = vector.broadcast %cst_30 : f32 to vector<16x16xf32>
    %75 = arith.mulf %74, %71 : vector<16x16xf32>
    %76 = arith.select %73, %71, %75 : vector<16x16xi1>, vector<16x16xf32>
    %77 = arith.addf %76, %5 : vector<16x16xf32>
    %cst_31 = arith.constant dense<0xFF800000> : vector<16xf32>
    %78 = vector.multi_reduction <maximumf>, %77, %cst_31 [1] : vector<16x16xf32> to vector<16xf32>
    %79 = vector.shape_cast %78 : vector<16xf32> to vector<16x1xf32>
    %80 = vector.broadcast %79 : vector<16x1xf32> to vector<16x16xf32>
    %81 = arith.subf %77, %80 : vector<16x16xf32>
    %82 = math.exp %81 : vector<16x16xf32>
    %cst_32 = arith.constant dense<0.000000e+00> : vector<16xf32>
    %83 = vector.multi_reduction <add>, %82, %cst_32 [1] : vector<16x16xf32> to vector<16xf32>
    %84 = vector.shape_cast %83 : vector<16xf32> to vector<16x1xf32>
    %cst_33 = arith.constant 4.000000e+00 : f32
    %85 = vector.broadcast %cst_33 : f32 to vector<16x1xf32>
    %86 = arith.mulf %84, %85 : vector<16x1xf32>
    %87 = tpu.reciprocal %86 {approx = true} : vector<16x1xf32> -> vector<16x1xf32>
    %88 = vector.broadcast %87 : vector<16x1xf32> to vector<16x16xf32>
    %89 = arith.mulf %82, %88 : vector<16x16xf32>
    %90 = vector.extract_strided_slice %11 {offsets = [0, 256], sizes = [16, 128], strides = [1, 1]} : vector<16x512xf32> to vector<16x128xf32>
    %cst_34 = arith.constant dense<0.000000e+00> : vector<16x128xf32>
    %91 = tpu.matmul %89, %90, %cst_34 {dimension_numbers = #tpu.dot_dimension_numbers<[1], [0], [0], [1], [0, 0, 1, 1], [], []>} : vector<16x16xf32>, vector<16x128xf32>, vector<16x128xf32> -> vector<16x128xf32>
    %92 = arith.addf %66, %91 : vector<16x128xf32>
    %93 = vector.extract_strided_slice %12 {offsets = [0, 3], sizes = [16, 1], strides = [1, 1]} : vector<16x4xf32> to vector<16x1xf32>
    %94 = vector.extract_strided_slice %13 {offsets = [3, 0], sizes = [1, 16], strides = [1, 1]} : vector<4x16xf32> to vector<1x16xf32>
    %95 = vector.broadcast %93 : vector<16x1xf32> to vector<16x16xf32>
    %96 = vector.broadcast %94 : vector<1x16xf32> to vector<16x16xf32>
    %97 = arith.addf %95, %96 : vector<16x16xf32>
    %cst_35 = arith.constant 0.000000e+00 : f32
    %98 = vector.broadcast %cst_35 : f32 to vector<16x16xf32>
    %99 = arith.cmpf ogt, %97, %98 : vector<16x16xf32>
    %cst_36 = arith.constant 2.000000e-01 : f32
    %100 = vector.broadcast %cst_36 : f32 to vector<16x16xf32>
    %101 = arith.mulf %100, %97 : vector<16x16xf32>
    %102 = arith.select %99, %97, %101 : vector<16x16xi1>, vector<16x16xf32>
    %103 = arith.addf %102, %5 : vector<16x16xf32>
    %cst_37 = arith.constant dense<0xFF800000> : vector<16xf32>
    %104 = vector.multi_reduction <maximumf>, %103, %cst_37 [1] : vector<16x16xf32> to vector<16xf32>
    %105 = vector.shape_cast %104 : vector<16xf32> to vector<16x1xf32>
    %106 = vector.broadcast %105 : vector<16x1xf32> to vector<16x16xf32>
    %107 = arith.subf %103, %106 : vector<16x16xf32>
    %108 = math.exp %107 : vector<16x16xf32>
    %cst_38 = arith.constant dense<0.000000e+00> : vector<16xf32>
    %109 = vector.multi_reduction <add>, %108, %cst_38 [1] : vector<16x16xf32> to vector<16xf32>
    %110 = vector.shape_cast %109 : vector<16xf32> to vector<16x1xf32>
    %cst_39 = arith.constant 4.000000e+00 : f32
    %111 = vector.broadcast %cst_39 : f32 to vector<16x1xf32>
    %112 = arith.mulf %110, %111 : vector<16x1xf32>
    %113 = tpu.reciprocal %112 {approx = true} : vector<16x1xf32> -> vector<16x1xf32>
    %114 = vector.broadcast %113 : vector<16x1xf32> to vector<16x16xf32>
    %115 = arith.mulf %108, %114 : vector<16x16xf32>
    %116 = vector.extract_strided_slice %11 {offsets = [0, 384], sizes = [16, 128], strides = [1, 1]} : vector<16x512xf32> to vector<16x128xf32>
    %cst_40 = arith.constant dense<0.000000e+00> : vector<16x128xf32>
    %117 = tpu.matmul %115, %116, %cst_40 {dimension_numbers = #tpu.dot_dimension_numbers<[1], [0], [0], [1], [0, 0, 1, 1], [], []>} : vector<16x16xf32>, vector<16x128xf32>, vector<16x128xf32> -> vector<16x128xf32>
    %118 = arith.addf %92, %117 : vector<16x128xf32>
    %119 = vector.broadcast %10 : vector<1x128xf32> to vector<16x128xf32>
    %120 = arith.addf %118, %119 : vector<16x128xf32>
    %cst_41 = arith.constant 0.000000e+00 : f32
    %121 = vector.broadcast %cst_41 : f32 to vector<16x128xf32>
    %122 = arith.cmpf ogt, %120, %121 : vector<16x128xf32>
    %123 = math.exp %120 : vector<16x128xf32>
    %cst_42 = arith.constant 1.000000e+00 : f32
    %124 = vector.broadcast %cst_42 : f32 to vector<16x128xf32>
    %125 = arith.subf %123, %124 : vector<16x128xf32>
    %126 = arith.select %122, %120, %125 : vector<16x128xi1>, vector<16x128xf32>
    %c0_43 = arith.constant 0 : index
    %c0_44 = arith.constant 0 : index
    %127 = vector.load %arg6[%c0_43, %c0_44] : memref<128x512xf32, #tpu.memory_space<vmem>>, vector<128x512xf32>
    %c0_45 = arith.constant 0 : index
    %c0_46 = arith.constant 0 : index
    %128 = vector.load %arg7[%c0_45, %c0_46] : memref<512x4xf32, #tpu.memory_space<vmem>>, vector<512x4xf32>
    %c0_47 = arith.constant 0 : index
    %c0_48 = arith.constant 0 : index
    %129 = vector.load %arg8[%c0_47, %c0_48] : memref<4x512xf32, #tpu.memory_space<vmem>>, vector<4x512xf32>
    %c0_49 = arith.constant 0 : index
    %c0_50 = arith.constant 0 : index
    %130 = vector.load %arg9[%c0_49, %c0_50] : memref<1x128xf32, #tpu.memory_space<vmem>>, vector<1x128xf32>
    %cst_51 = arith.constant dense<0.000000e+00> : vector<16x512xf32>
    %131 = tpu.matmul %126, %127, %cst_51 {dimension_numbers = #tpu.dot_dimension_numbers<[1], [0], [0], [1], [0, 0, 1, 1], [], []>} : vector<16x128xf32>, vector<128x512xf32>, vector<16x512xf32> -> vector<16x512xf32>
    %cst_52 = arith.constant dense<0.000000e+00> : vector<16x4xf32>
    %132 = tpu.matmul %131, %128, %cst_52 {dimension_numbers = #tpu.dot_dimension_numbers<[1], [0], [0], [1], [0, 0, 1, 1], [], []>} : vector<16x512xf32>, vector<512x4xf32>, vector<16x4xf32> -> vector<16x4xf32>
    "tpu.trace_start"() <{level = 10 : i32, message = "hk,nk->hn"}> : () -> ()
    %cst_53 = arith.constant dense<0.000000e+00> : vector<4x16xf32>
    %133 = tpu.matmul %129, %131, %cst_53 {dimension_numbers = #tpu.dot_dimension_numbers<[1], [1], [0], [0], [0, 0, 1, 0], [], []>} : vector<4x512xf32>, vector<16x512xf32>, vector<4x16xf32> -> vector<4x16xf32>
    %cst_54 = arith.constant 0.000000e+00 : f32
    "tpu.trace_stop"() : () -> ()
    %134 = vector.broadcast %cst_54 : f32 to vector<16x128xf32>
    %135 = vector.extract_strided_slice %132 {offsets = [0, 0], sizes = [16, 1], strides = [1, 1]} : vector<16x4xf32> to vector<16x1xf32>
    %136 = vector.extract_strided_slice %133 {offsets = [0, 0], sizes = [1, 16], strides = [1, 1]} : vector<4x16xf32> to vector<1x16xf32>
    %137 = vector.broadcast %135 : vector<16x1xf32> to vector<16x16xf32>
    %138 = vector.broadcast %136 : vector<1x16xf32> to vector<16x16xf32>
    %139 = arith.addf %137, %138 : vector<16x16xf32>
    %cst_55 = arith.constant 0.000000e+00 : f32
    %140 = vector.broadcast %cst_55 : f32 to vector<16x16xf32>
    %141 = arith.cmpf ogt, %139, %140 : vector<16x16xf32>
    %cst_56 = arith.constant 2.000000e-01 : f32
    %142 = vector.broadcast %cst_56 : f32 to vector<16x16xf32>
    %143 = arith.mulf %142, %139 : vector<16x16xf32>
    %144 = arith.select %141, %139, %143 : vector<16x16xi1>, vector<16x16xf32>
    %145 = arith.addf %144, %5 : vector<16x16xf32>
    %cst_57 = arith.constant dense<0xFF800000> : vector<16xf32>
    %146 = vector.multi_reduction <maximumf>, %145, %cst_57 [1] : vector<16x16xf32> to vector<16xf32>
    %147 = vector.shape_cast %146 : vector<16xf32> to vector<16x1xf32>
    %148 = vector.broadcast %147 : vector<16x1xf32> to vector<16x16xf32>
    %149 = arith.subf %145, %148 : vector<16x16xf32>
    %150 = math.exp %149 : vector<16x16xf32>
    %cst_58 = arith.constant dense<0.000000e+00> : vector<16xf32>
    %151 = vector.multi_reduction <add>, %150, %cst_58 [1] : vector<16x16xf32> to vector<16xf32>
    %152 = vector.shape_cast %151 : vector<16xf32> to vector<16x1xf32>
    %cst_59 = arith.constant 4.000000e+00 : f32
    %153 = vector.broadcast %cst_59 : f32 to vector<16x1xf32>
    %154 = arith.mulf %152, %153 : vector<16x1xf32>
    %155 = tpu.reciprocal %154 {approx = true} : vector<16x1xf32> -> vector<16x1xf32>
    %156 = vector.broadcast %155 : vector<16x1xf32> to vector<16x16xf32>
    %157 = arith.mulf %150, %156 : vector<16x16xf32>
    %158 = vector.extract_strided_slice %131 {offsets = [0, 0], sizes = [16, 128], strides = [1, 1]} : vector<16x512xf32> to vector<16x128xf32>
    %cst_60 = arith.constant dense<0.000000e+00> : vector<16x128xf32>
    %159 = tpu.matmul %157, %158, %cst_60 {dimension_numbers = #tpu.dot_dimension_numbers<[1], [0], [0], [1], [0, 0, 1, 1], [], []>} : vector<16x16xf32>, vector<16x128xf32>, vector<16x128xf32> -> vector<16x128xf32>
    %160 = arith.addf %134, %159 : vector<16x128xf32>
    %161 = vector.extract_strided_slice %132 {offsets = [0, 1], sizes = [16, 1], strides = [1, 1]} : vector<16x4xf32> to vector<16x1xf32>
    %162 = vector.extract_strided_slice %133 {offsets = [1, 0], sizes = [1, 16], strides = [1, 1]} : vector<4x16xf32> to vector<1x16xf32>
    %163 = vector.broadcast %161 : vector<16x1xf32> to vector<16x16xf32>
    %164 = vector.broadcast %162 : vector<1x16xf32> to vector<16x16xf32>
    %165 = arith.addf %163, %164 : vector<16x16xf32>
    %cst_61 = arith.constant 0.000000e+00 : f32
    %166 = vector.broadcast %cst_61 : f32 to vector<16x16xf32>
    %167 = arith.cmpf ogt, %165, %166 : vector<16x16xf32>
    %cst_62 = arith.constant 2.000000e-01 : f32
    %168 = vector.broadcast %cst_62 : f32 to vector<16x16xf32>
    %169 = arith.mulf %168, %165 : vector<16x16xf32>
    %170 = arith.select %167, %165, %169 : vector<16x16xi1>, vector<16x16xf32>
    %171 = arith.addf %170, %5 : vector<16x16xf32>
    %cst_63 = arith.constant dense<0xFF800000> : vector<16xf32>
    %172 = vector.multi_reduction <maximumf>, %171, %cst_63 [1] : vector<16x16xf32> to vector<16xf32>
    %173 = vector.shape_cast %172 : vector<16xf32> to vector<16x1xf32>
    %174 = vector.broadcast %173 : vector<16x1xf32> to vector<16x16xf32>
    %175 = arith.subf %171, %174 : vector<16x16xf32>
    %176 = math.exp %175 : vector<16x16xf32>
    %cst_64 = arith.constant dense<0.000000e+00> : vector<16xf32>
    %177 = vector.multi_reduction <add>, %176, %cst_64 [1] : vector<16x16xf32> to vector<16xf32>
    %178 = vector.shape_cast %177 : vector<16xf32> to vector<16x1xf32>
    %cst_65 = arith.constant 4.000000e+00 : f32
    %179 = vector.broadcast %cst_65 : f32 to vector<16x1xf32>
    %180 = arith.mulf %178, %179 : vector<16x1xf32>
    %181 = tpu.reciprocal %180 {approx = true} : vector<16x1xf32> -> vector<16x1xf32>
    %182 = vector.broadcast %181 : vector<16x1xf32> to vector<16x16xf32>
    %183 = arith.mulf %176, %182 : vector<16x16xf32>
    %184 = vector.extract_strided_slice %131 {offsets = [0, 128], sizes = [16, 128], strides = [1, 1]} : vector<16x512xf32> to vector<16x128xf32>
    %cst_66 = arith.constant dense<0.000000e+00> : vector<16x128xf32>
    %185 = tpu.matmul %183, %184, %cst_66 {dimension_numbers = #tpu.dot_dimension_numbers<[1], [0], [0], [1], [0, 0, 1, 1], [], []>} : vector<16x16xf32>, vector<16x128xf32>, vector<16x128xf32> -> vector<16x128xf32>
    %186 = arith.addf %160, %185 : vector<16x128xf32>
    %187 = vector.extract_strided_slice %132 {offsets = [0, 2], sizes = [16, 1], strides = [1, 1]} : vector<16x4xf32> to vector<16x1xf32>
    %188 = vector.extract_strided_slice %133 {offsets = [2, 0], sizes = [1, 16], strides = [1, 1]} : vector<4x16xf32> to vector<1x16xf32>
    %189 = vector.broadcast %187 : vector<16x1xf32> to vector<16x16xf32>
    %190 = vector.broadcast %188 : vector<1x16xf32> to vector<16x16xf32>
    %191 = arith.addf %189, %190 : vector<16x16xf32>
    %cst_67 = arith.constant 0.000000e+00 : f32
    %192 = vector.broadcast %cst_67 : f32 to vector<16x16xf32>
    %193 = arith.cmpf ogt, %191, %192 : vector<16x16xf32>
    %cst_68 = arith.constant 2.000000e-01 : f32
    %194 = vector.broadcast %cst_68 : f32 to vector<16x16xf32>
    %195 = arith.mulf %194, %191 : vector<16x16xf32>
    %196 = arith.select %193, %191, %195 : vector<16x16xi1>, vector<16x16xf32>
    %197 = arith.addf %196, %5 : vector<16x16xf32>
    %cst_69 = arith.constant dense<0xFF800000> : vector<16xf32>
    %198 = vector.multi_reduction <maximumf>, %197, %cst_69 [1] : vector<16x16xf32> to vector<16xf32>
    %199 = vector.shape_cast %198 : vector<16xf32> to vector<16x1xf32>
    %200 = vector.broadcast %199 : vector<16x1xf32> to vector<16x16xf32>
    %201 = arith.subf %197, %200 : vector<16x16xf32>
    %202 = math.exp %201 : vector<16x16xf32>
    %cst_70 = arith.constant dense<0.000000e+00> : vector<16xf32>
    %203 = vector.multi_reduction <add>, %202, %cst_70 [1] : vector<16x16xf32> to vector<16xf32>
    %204 = vector.shape_cast %203 : vector<16xf32> to vector<16x1xf32>
    %cst_71 = arith.constant 4.000000e+00 : f32
    %205 = vector.broadcast %cst_71 : f32 to vector<16x1xf32>
    %206 = arith.mulf %204, %205 : vector<16x1xf32>
    %207 = tpu.reciprocal %206 {approx = true} : vector<16x1xf32> -> vector<16x1xf32>
    %208 = vector.broadcast %207 : vector<16x1xf32> to vector<16x16xf32>
    %209 = arith.mulf %202, %208 : vector<16x16xf32>
    %210 = vector.extract_strided_slice %131 {offsets = [0, 256], sizes = [16, 128], strides = [1, 1]} : vector<16x512xf32> to vector<16x128xf32>
    %cst_72 = arith.constant dense<0.000000e+00> : vector<16x128xf32>
    %211 = tpu.matmul %209, %210, %cst_72 {dimension_numbers = #tpu.dot_dimension_numbers<[1], [0], [0], [1], [0, 0, 1, 1], [], []>} : vector<16x16xf32>, vector<16x128xf32>, vector<16x128xf32> -> vector<16x128xf32>
    %212 = arith.addf %186, %211 : vector<16x128xf32>
    %213 = vector.extract_strided_slice %132 {offsets = [0, 3], sizes = [16, 1], strides = [1, 1]} : vector<16x4xf32> to vector<16x1xf32>
    %214 = vector.extract_strided_slice %133 {offsets = [3, 0], sizes = [1, 16], strides = [1, 1]} : vector<4x16xf32> to vector<1x16xf32>
    %215 = vector.broadcast %213 : vector<16x1xf32> to vector<16x16xf32>
    %216 = vector.broadcast %214 : vector<1x16xf32> to vector<16x16xf32>
    %217 = arith.addf %215, %216 : vector<16x16xf32>
    %cst_73 = arith.constant 0.000000e+00 : f32
    %218 = vector.broadcast %cst_73 : f32 to vector<16x16xf32>
    %219 = arith.cmpf ogt, %217, %218 : vector<16x16xf32>
    %cst_74 = arith.constant 2.000000e-01 : f32
    %220 = vector.broadcast %cst_74 : f32 to vector<16x16xf32>
    %221 = arith.mulf %220, %217 : vector<16x16xf32>
    %222 = arith.select %219, %217, %221 : vector<16x16xi1>, vector<16x16xf32>
    %223 = arith.addf %222, %5 : vector<16x16xf32>
    %cst_75 = arith.constant dense<0xFF800000> : vector<16xf32>
    %224 = vector.multi_reduction <maximumf>, %223, %cst_75 [1] : vector<16x16xf32> to vector<16xf32>
    %225 = vector.shape_cast %224 : vector<16xf32> to vector<16x1xf32>
    %226 = vector.broadcast %225 : vector<16x1xf32> to vector<16x16xf32>
    %227 = arith.subf %223, %226 : vector<16x16xf32>
    %228 = math.exp %227 : vector<16x16xf32>
    %cst_76 = arith.constant dense<0.000000e+00> : vector<16xf32>
    %229 = vector.multi_reduction <add>, %228, %cst_76 [1] : vector<16x16xf32> to vector<16xf32>
    %230 = vector.shape_cast %229 : vector<16xf32> to vector<16x1xf32>
    %cst_77 = arith.constant 4.000000e+00 : f32
    %231 = vector.broadcast %cst_77 : f32 to vector<16x1xf32>
    %232 = arith.mulf %230, %231 : vector<16x1xf32>
    %233 = tpu.reciprocal %232 {approx = true} : vector<16x1xf32> -> vector<16x1xf32>
    %234 = vector.broadcast %233 : vector<16x1xf32> to vector<16x16xf32>
    %235 = arith.mulf %228, %234 : vector<16x16xf32>
    %236 = vector.extract_strided_slice %131 {offsets = [0, 384], sizes = [16, 128], strides = [1, 1]} : vector<16x512xf32> to vector<16x128xf32>
    %cst_78 = arith.constant dense<0.000000e+00> : vector<16x128xf32>
    %237 = tpu.matmul %235, %236, %cst_78 {dimension_numbers = #tpu.dot_dimension_numbers<[1], [0], [0], [1], [0, 0, 1, 1], [], []>} : vector<16x16xf32>, vector<16x128xf32>, vector<16x128xf32> -> vector<16x128xf32>
    %238 = arith.addf %212, %237 : vector<16x128xf32>
    %239 = vector.broadcast %130 : vector<1x128xf32> to vector<16x128xf32>
    %240 = arith.addf %238, %239 : vector<16x128xf32>
    %c0_79 = arith.constant 0 : index
    %c0_80 = arith.constant 0 : index
    %241 = vector.load %arg10[%c0_79, %c0_80] : memref<16x128xf32, #tpu.memory_space<vmem>>, vector<16x128xf32>
    tpu.vector_store %arg10[%c0_79, %c0_80], %240 {strides = array<i32>} : memref<16x128xf32, #tpu.memory_space<vmem>>, vector<16x128xf32>,
    return
  }
}

</mosaic_0001>

<llo_original>
// kernel: tpu_custom_call.1
$region0: #{tpu_custom_call.1}
  #allocation0 [shape = 'u32[]', space=smem, size = 0x4, offset = 0x4, fixed_abs, tag = 'smem constant byte address 0x4 - core index']
  #allocation1 [shape = 'u32[144,128]{1,0:T(1,128)}', space=vmem, size = 0x12000, scoped, tag = 'internal scratch']
  %s0 = inlined_call_operand.vmem [shape: f32[16,8], index: 0, kind: input, shape index: {}]
  %s1 = inlined_call_operand.vmem [shape: f32[16,16], index: 1, kind: input, shape index: {}]
  %s2 = inlined_call_operand.vmem [shape: f32[8,512], index: 2, kind: input, shape index: {}]
  %s3 = inlined_call_operand.vmem [shape: f32[512,4], index: 3, kind: input, shape index: {}]
  %s4 = inlined_call_operand.vmem [shape: f32[4,512], index: 4, kind: input, shape index: {}]
  %s5 = inlined_call_operand.vmem [shape: f32[1,128], index: 5, kind: input, shape index: {}]
  %s6 = inlined_call_operand.vmem [shape: f32[128,512], index: 6, kind: input, shape index: {}]
  %s7 = inlined_call_operand.vmem [shape: f32[512,4], index: 7, kind: input, shape index: {}]
  %s8 = inlined_call_operand.vmem [shape: f32[4,512], index: 8, kind: input, shape index: {}]
  %s9 = inlined_call_operand.vmem [shape: f32[1,128], index: 9, kind: input, shape index: {}]
  %s10 = inlined_call_operand.hbm [shape: f32[16,128], index: 10, kind: output, shape index: {}]
  %s11 = sld [smem:[#allocation0]]
  $region50: #{tpu_custom_call.1} parent=0
    _
  %s13 = ssub.s32 1, %s11
  %s14 = scalar_select 0, %s13, %s11
  $region1: #{tpu_custom_call.1} parent=0
    #allocation2 [shape = 'u8[8192]{0}', space=vmem, size = 0x2000, scoped, tag = 'output window, operand 0, single buffered']
    #allocation3 [shape = 's32[1]{0}', space=sflag, size = 0x4, scoped, tag = 'scoped memory for tpu_custom_call.1']
    %15 = vsyncpa [#allocation3], 0
    // Predicated region
    $region2: #{tpu_custom_call.1} parent=1 // pred_check
      _
    $region3: #{tpu_custom_call.1} parent=1 // pred_check_branch
      %17 = sbr.rel (0) target = $region5
    $region4: #{tpu_custom_call.1} parent=1 // pred_region
      _
    $region5: #{tpu_custom_call.1} parent=1 // pred_fallthru
      _
    // Predicated region
    $region6: #{tpu_custom_call.1} parent=1 // pred_check
      _
    $region7: #{tpu_custom_call.1} parent=1 // pred_check_branch
      %19 = sbr.rel (0) target = $region9
    $region8: #{tpu_custom_call.1} parent=1 // pred_region
      _
    $region9: #{tpu_custom_call.1} parent=1 // pred_fallthru
      _
    // Predicated region
    $region10: #{tpu_custom_call.1} parent=1 // pred_check
      _
    $region11: #{tpu_custom_call.1} parent=1 // pred_check_branch
      %21 = sbr.rel (0) target = $region13
    $region12: #{tpu_custom_call.1} parent=1 // pred_region
      _
    $region13: #{tpu_custom_call.1} parent=1 // pred_fallthru
      _
    // Predicated region
    $region14: #{tpu_custom_call.1} parent=1 // pred_check
      _
    $region15: #{tpu_custom_call.1} parent=1 // pred_check_branch
      %23 = sbr.rel (0) target = $region17
    $region16: #{tpu_custom_call.1} parent=1 // pred_region
      _
    $region17: #{tpu_custom_call.1} parent=1 // pred_fallthru
      _
    // Predicated region
    $region18: #{tpu_custom_call.1} parent=1 // pred_check
      _
    $region19: #{tpu_custom_call.1} parent=1 // pred_check_branch
      %25 = sbr.rel (0) target = $region21
    $region20: #{tpu_custom_call.1} parent=1 // pred_region
      _
    $region21: #{tpu_custom_call.1} parent=1 // pred_fallthru
      _
    // Predicated region
    $region22: #{tpu_custom_call.1} parent=1 // pred_check
      _
    $region23: #{tpu_custom_call.1} parent=1 // pred_check_branch
      %27 = sbr.rel (0) target = $region25
    $region24: #{tpu_custom_call.1} parent=1 // pred_region
      _
    $region25: #{tpu_custom_call.1} parent=1 // pred_fallthru
      _
    // Predicated region
    $region26: #{tpu_custom_call.1} parent=1 // pred_check
      _
    $region27: #{tpu_custom_call.1} parent=1 // pred_check_branch
      %29 = sbr.rel (0) target = $region29
    $region28: #{tpu_custom_call.1} parent=1 // pred_region
      _
    $region29: #{tpu_custom_call.1} parent=1 // pred_fallthru
      _
    // Predicated region
    $region30: #{tpu_custom_call.1} parent=1 // pred_check
      _
    $region31: #{tpu_custom_call.1} parent=1 // pred_check_branch
      %31 = sbr.rel (0) target = $region33
    $region32: #{tpu_custom_call.1} parent=1 // pred_region
      _
    $region33: #{tpu_custom_call.1} parent=1 // pred_fallthru
      _
    // Predicated region
    $region34: #{tpu_custom_call.1} parent=1 // pred_check
      _
    $region35: #{tpu_custom_call.1} parent=1 // pred_check_branch
      %33 = sbr.rel (0) target = $region37
    $region36: #{tpu_custom_call.1} parent=1 // pred_region
      _
    $region37: #{tpu_custom_call.1} parent=1 // pred_fallthru
      _
    // Predicated region
    $region38: #{tpu_custom_call.1} parent=1 // pred_check
      _
    $region39: #{tpu_custom_call.1} parent=1 // pred_check_branch
      %35 = sbr.rel (0) target = $region41
    $region40: #{tpu_custom_call.1} parent=1 // pred_region
      _
    $region41: #{tpu_custom_call.1} parent=1 // pred_fallthru
      _
    %v36 = vld [vmem:[%s1] sm:$0xff]
    %v37 = vld [vmem:[%s1 + $0x8] sm:$0xff]
    %vm38 = vcmp.gt.f32.partialorder %v36, 0.0
    %vm39 = vcmp.gt.f32.partialorder %v37, 0.0
    %v40 = vsel %vm38, 0.0, -1e+30
    %v41 = vsel %vm39, 0.0, -1e+30
    %v42 = vld [vmem:[%s0] sm:$0xff]
    %v43 = vld [vmem:[%s0 + $0x8] sm:$0xff]
    %v44 = vld [vmem:[%s2] sm:$0xff]
    %v45 = vld [vmem:[%s2 + $0x8] sm:$0xff]
    %v46 = vld [vmem:[%s2 + $0x10] sm:$0xff]
    %v47 = vld [vmem:[%s2 + $0x18] sm:$0xff]
    %v48 = vld [vmem:[%s3] sm:$0xff]
    %v49 = vld [vmem:[%s3 + $0x8] sm:$0xff]
    %v50 = vld [vmem:[%s3 + $0x10] sm:$0xff]
    %v51 = vld [vmem:[%s3 + $0x18] sm:$0xff]
    %v52 = vld [vmem:[%s3 + $0x20] sm:$0xff]
    %v53 = vld [vmem:[%s3 + $0x28] sm:$0xff]
    %v54 = vld [vmem:[%s3 + $0x30] sm:$0xff]
    %v55 = vld [vmem:[%s3 + $0x38] sm:$0xff]
    %v56 = vld [vmem:[%s3 + $0x40] sm:$0xff]
    %v57 = vld [vmem:[%s3 + $0x48] sm:$0xff]
    %v58 = vld [vmem:[%s3 + $0x50] sm:$0xff]
    %v59 = vld [vmem:[%s3 + $0x58] sm:$0xff]
    %v60 = vld [vmem:[%s3 + $0x60] sm:$0xff]
    %v61 = vld [vmem:[%s3 + $0x68] sm:$0xff]
    %v62 = vld [vmem:[%s3 + $0x70] sm:$0xff]
    %v63 = vld [vmem:[%s3 + $0x78] sm:$0xff]
    %v64 = vld [vmem:[%s3 + $0x80] sm:$0xff]
    %v65 = vld [vmem:[%s3 + $0x88] sm:$0xff]
    %v66 = vld [vmem:[%s3 + $0x90] sm:$0xff]
    %v67 = vld [vmem:[%s3 + $0x98] sm:$0xff]
    %v68 = vld [vmem:[%s3 + $0xa0] sm:$0xff]
    %v69 = vld [vmem:[%s3 + $0xa8] sm:$0xff]
    %v70 = vld [vmem:[%s3 + $0xb0] sm:$0xff]
    %v71 = vld [vmem:[%s3 + $0xb8] sm:$0xff]
    %v72 = vld [vmem:[%s3 + $0xc0] sm:$0xff]
    %v73 = vld [vmem:[%s3 + $0xc8] sm:$0xff]
    %v74 = vld [vmem:[%s3 + $0xd0] sm:$0xff]
    %v75 = vld [vmem:[%s3 + $0xd8] sm:$0xff]
    %v76 = vld [vmem:[%s3 + $0xe0] sm:$0xff]
    %v77 = vld [vmem:[%s3 + $0xe8] sm:$0xff]
    %v78 = vld [vmem:[%s3 + $0xf0] sm:$0xff]
    %v79 = vld [vmem:[%s3 + $0xf8] sm:$0xff]
    %v80 = vld [vmem:[%s3 + $0x100] sm:$0xff]
    %v81 = vld [vmem:[%s3 + $0x108] sm:$0xff]
    %v82 = vld [vmem:[%s3 + $0x110] sm:$0xff]
    %v83 = vld [vmem:[%s3 + $0x118] sm:$0xff]
    %v84 = vld [vmem:[%s3 + $0x120] sm:$0xff]
    %v85 = vld [vmem:[%s3 + $0x128] sm:$0xff]
    %v86 = vld [vmem:[%s3 + $0x130] sm:$0xff]
    %v87 = vld [vmem:[%s3 + $0x138] sm:$0xff]
    %v88 = vld [vmem:[%s3 + $0x140] sm:$0xff]
    %v89 = vld [vmem:[%s3 + $0x148] sm:$0xff]
    %v90 = vld [vmem:[%s3 + $0x150] sm:$0xff]
    %v91 = vld [vmem:[%s3 + $0x158] sm:$0xff]
    %v92 = vld [vmem:[%s3 + $0x160] sm:$0xff]
    %v93 = vld [vmem:[%s3 + $0x168] sm:$0xff]
    %v94 = vld [vmem:[%s3 + $0x170] sm:$0xff]
    %v95 = vld [vmem:[%s3 + $0x178] sm:$0xff]
    %v96 = vld [vmem:[%s3 + $0x180] sm:$0xff]
    %v97 = vld [vmem:[%s3 + $0x188] sm:$0xff]
    %v98 = vld [vmem:[%s3 + $0x190] sm:$0xff]
    %v99 = vld [vmem:[%s3 + $0x198] sm:$0xff]
    %v100 = vld [vmem:[%s3 + $0x1a0] sm:$0xff]
    %v101 = vld [vmem:[%s3 + $0x1a8] sm:$0xff]
    %v102 = vld [vmem:[%s3 + $0x1b0] sm:$0xff]
    %v103 = vld [vmem:[%s3 + $0x1b8] sm:$0xff]
    %v104 = vld [vmem:[%s3 + $0x1c0] sm:$0xff]
    %v105 = vld [vmem:[%s3 + $0x1c8] sm:$0xff]
    %v106 = vld [vmem:[%s3 + $0x1d0] sm:$0xff]
    %v107 = vld [vmem:[%s3 + $0x1d8] sm:$0xff]
    %v108 = vld [vmem:[%s3 + $0x1e0] sm:$0xff]
    %v109 = vld [vmem:[%s3 + $0x1e8] sm:$0xff]
    %v110 = vld [vmem:[%s3 + $0x1f0] sm:$0xff]
    %v111 = vld [vmem:[%s3 + $0x1f8] sm:$0xff]
    %v112 = vld [vmem:[%s4] sm:$0xff]
    %v113 = vld [vmem:[%s4 + $0x8] sm:$0xff]
    %v114 = vld [vmem:[%s5] sm:$0x1]
    %vm115 = vcmask 64512
    %v117 = vsel %vm115, %v42, 0
    %v120 = vsel %vm115, %v43, 0
    %122 = vmatprep.subr.mxu0 0.0
    %123 = vmatpush1.msra.mxu0 0.0
    %124 = vmatprep.subr.mxu0 0.0
    %125 = vmatpush1.msra.mxu0 0.0
    %126 = vmatprep.subr.mxu0 0.0
    %127 = vmatpush1.msra.mxu0 0.0
    %128 = vmatprep.subr.mxu0 0.0
    %129 = vmatpush1.msra.mxu0 0.0
    %130 = vmatprep.subr.mxu0 0.0
    %131 = vmatpush1.msra.mxu0 0.0
    %132 = vmatprep.subr.mxu0 0.0
    %133 = vmatpush1.msra.mxu0 0.0
    %134 = vmatprep.subr.mxu0 0.0
    %135 = vmatpush1.msra.mxu0 0.0
    %136 = vmatprep.subr.mxu0 0.0
    %137 = vmatpush1.msra.mxu0 0.0
    %138 = vmatprep.subr.mxu0 0.0
    %139 = vmatpush1.msra.mxu0 0.0
    %140 = vmatprep.subr.mxu0 0.0
    %141 = vmatpush1.msra.mxu0 0.0
    %142 = vmatprep.subr.mxu0 0.0
    %143 = vmatpush1.msra.mxu0 0.0
    %144 = vmatprep.subr.mxu0 0.0
    %145 = vmatpush1.msra.mxu0 0.0
    %146 = vmatprep.subr.mxu0 0.0
    %147 = vmatpush1.msra.mxu0 0.0
    %148 = vmatprep.subr.mxu0 0.0
    %149 = vmatpush1.msra.mxu0 0.0
    %150 = vmatprep.subr.mxu0 0.0
    %151 = vmatpush1.msra.mxu0 0.0
    %152 = vmatprep.subr.mxu0 %v45
    %153 = vmatpush1.msra.mxu0 %v44
    %154 = vmatprep.subr.mxu0 0.0
    %155 = vmatpush2.msra.mxu0 0.0
    %156 = vmatprep.subr.mxu0 0.0
    %157 = vmatpush2.msra.mxu0 0.0
    %158 = vmatprep.subr.mxu0 0.0
    %159 = vmatpush2.msra.mxu0 0.0
    %160 = vmatprep.subr.mxu0 0.0
    %161 = vmatpush2.msra.mxu0 0.0
    %162 = vmatprep.subr.mxu0 0.0
    %163 = vmatpush2.msra.mxu0 0.0
    %164 = vmatprep.subr.mxu0 0.0
    %165 = vmatpush2.msra.mxu0 0.0
    %166 = vmatprep.subr.mxu0 0.0
    %167 = vmatpush2.msra.mxu0 0.0
    %168 = vmatprep.subr.mxu0 0.0
    %169 = vmatpush2.msra.mxu0 0.0
    %170 = vmatprep.subr.mxu0 0.0
    %171 = vmatpush2.msra.mxu0 0.0
    %172 = vmatprep.subr.mxu0 0.0
    %173 = vmatpush2.msra.mxu0 0.0
    %174 = vmatprep.subr.mxu0 0.0
    %175 = vmatpush2.msra.mxu0 0.0
    %176 = vmatprep.subr.mxu0 0.0
    %177 = vmatpush2.msra.mxu0 0.0
    %178 = vmatprep.subr.mxu0 0.0
    %179 = vmatpush2.msra.mxu0 0.0
    %180 = vmatprep.subr.mxu0 0.0
    %181 = vmatpush2.msra.mxu0 0.0
    %182 = vmatprep.subr.mxu0 0.0
    %183 = vmatpush2.msra.mxu0 0.0
    %184 = vmatprep.subr.mxu0 0.0
    %185 = vmatpush2.msra.mxu0 0.0
    %186 = vmatprep.mubr.f32.mxu0 0.0
    %187 = vmatmul.mubr.f32.gmra.mxu0 %v117
    %v188 = vpop.f32.mrf.mxu0
    %v189 = vadd.f32 0.0, %v188
    %v190 = vpop.f32.mrf.mxu0
    %v191 = vadd.f32 0.0, %v190
    %192 = vmatprep.mubr.f32.mxu0 0.0
    %193 = vmatmul.mubr.f32.gmra.mxu0 %v120
    %v194 = vpop.f32.mrf.mxu0
    %v195 = vadd.f32 0.0, %v194
    %v196 = vpop.f32.mrf.mxu0
    %v197 = vadd.f32 0.0, %v196
    %198 = vdwg.mxu0
    %199 = vmatprep.subr.mxu0 0.0
    %200 = vmatpush1.msra.mxu0 0.0
    %201 = vmatprep.subr.mxu0 0.0
    %202 = vmatpush1.msra.mxu0 0.0
    %203 = vmatprep.subr.mxu0 0.0
    %204 = vmatpush1.msra.mxu0 0.0
    %205 = vmatprep.subr.mxu0 0.0
    %206 = vmatpush1.msra.mxu0 0.0
    %207 = vmatprep.subr.mxu0 0.0
    %208 = vmatpush1.msra.mxu0 0.0
    %209 = vmatprep.subr.mxu0 0.0
    %210 = vmatpush1.msra.mxu0 0.0
    %211 = vmatprep.subr.mxu0 0.0
    %212 = vmatpush1.msra.mxu0 0.0
    %213 = vmatprep.subr.mxu0 0.0
    %214 = vmatpush1.msra.mxu0 0.0
    %215 = vmatprep.subr.mxu0 0.0
    %216 = vmatpush1.msra.mxu0 0.0
    %217 = vmatprep.subr.mxu0 0.0
    %218 = vmatpush1.msra.mxu0 0.0
    %219 = vmatprep.subr.mxu0 0.0
    %220 = vmatpush1.msra.mxu0 0.0
    %221 = vmatprep.subr.mxu0 0.0
    %222 = vmatpush1.msra.mxu0 0.0
    %223 = vmatprep.subr.mxu0 0.0
    %224 = vmatpush1.msra.mxu0 0.0
    %225 = vmatprep.subr.mxu0 0.0
    %226 = vmatpush1.msra.mxu0 0.0
    %227 = vmatprep.subr.mxu0 0.0
    %228 = vmatpush1.msra.mxu0 0.0
    %229 = vmatprep.subr.mxu0 %v47
    %230 = vmatpush1.msra.mxu0 %v46
    %231 = vmatprep.subr.mxu0 0.0
    %232 = vmatpush2.msra.mxu0 0.0
    %233 = vmatprep.subr.mxu0 0.0
    %234 = vmatpush2.msra.mxu0 0.0
    %235 = vmatprep.subr.mxu0 0.0
    %236 = vmatpush2.msra.mxu0 0.0
    %237 = vmatprep.subr.mxu0 0.0
    %238 = vmatpush2.msra.mxu0 0.0
    %239 = vmatprep.subr.mxu0 0.0
    %240 = vmatpush2.msra.mxu0 0.0
    %241 = vmatprep.subr.mxu0 0.0
    %242 = vmatpush2.msra.mxu0 0.0
    %243 = vmatprep.subr.mxu0 0.0
    %244 = vmatpush2.msra.mxu0 0.0
    %245 = vmatprep.subr.mxu0 0.0
    %246 = vmatpush2.msra.mxu0 0.0
    %247 = vmatprep.subr.mxu0 0.0
    %248 = vmatpush2.msra.mxu0 0.0
    %249 = vmatprep.subr.mxu0 0.0
    %250 = vmatpush2.msra.mxu0 0.0
    %251 = vmatprep.subr.mxu0 0.0
    %252 = vmatpush2.msra.mxu0 0.0
    %253 = vmatprep.subr.mxu0 0.0
    %254 = vmatpush2.msra.mxu0 0.0
    %255 = vmatprep.subr.mxu0 0.0
    %256 = vmatpush2.msra.mxu0 0.0
    %257 = vmatprep.subr.mxu0 0.0
    %258 = vmatpush2.msra.mxu0 0.0
    %259 = vmatprep.subr.mxu0 0.0
    %260 = vmatpush2.msra.mxu0 0.0
    %261 = vmatprep.subr.mxu0 0.0
    %262 = vmatpush2.msra.mxu0 0.0
    %263 = vmatprep.mubr.f32.mxu0 0.0
    %264 = vmatmul.mubr.f32.gmra.mxu0 %v117
    %v265 = vpop.f32.mrf.mxu0
    %v266 = vadd.f32 0.0, %v265
    %v267 = vpop.f32.mrf.mxu0
    %v268 = vadd.f32 0.0, %v267
    %269 = vmatprep.mubr.f32.mxu0 0.0
    %270 = vmatmul.mubr.f32.gmra.mxu0 %v120
    %v271 = vpop.f32.mrf.mxu0
    %v272 = vadd.f32 0.0, %v271
    %v273 = vpop.f32.mrf.mxu0
    %v274 = vadd.f32 0.0, %v273
    %275 = vdwg.mxu0
    %276 = vmatprep.subr.mxu0 0.0
    %277 = vmatpush1.msra.mxu0 %v63
    %278 = vmatprep.subr.mxu0 0.0
    %279 = vmatpush1.msra.mxu0 %v62
    %280 = vmatprep.subr.mxu0 0.0
    %281 = vmatpush1.msra.mxu0 %v61
    %282 = vmatprep.subr.mxu0 0.0
    %283 = vmatpush1.msra.mxu0 %v60
    %284 = vmatprep.subr.mxu0 0.0
    %285 = vmatpush1.msra.mxu0 %v59
    %286 = vmatprep.subr.mxu0 0.0
    %287 = vmatpush1.msra.mxu0 %v58
    %288 = vmatprep.subr.mxu0 0.0
    %289 = vmatpush1.msra.mxu0 %v57
    %290 = vmatprep.subr.mxu0 0.0
    %291 = vmatpush1.msra.mxu0 %v56
    %292 = vmatprep.subr.mxu0 0.0
    %293 = vmatpush1.msra.mxu0 %v55
    %294 = vmatprep.subr.mxu0 0.0
    %295 = vmatpush1.msra.mxu0 %v54
    %296 = vmatprep.subr.mxu0 0.0
    %297 = vmatpush1.msra.mxu0 %v53
    %298 = vmatprep.subr.mxu0 0.0
    %299 = vmatpush1.msra.mxu0 %v52
    %300 = vmatprep.subr.mxu0 0.0
    %301 = vmatpush1.msra.mxu0 %v51
    %302 = vmatprep.subr.mxu0 0.0
    %303 = vmatpush1.msra.mxu0 %v50
    %304 = vmatprep.subr.mxu0 0.0
    %305 = vmatpush1.msra.mxu0 %v49
    %306 = vmatprep.subr.mxu0 0.0
    %307 = vmatpush1.msra.mxu0 %v48
    %308 = vmatprep.subr.mxu0 0.0
    %309 = vmatpush2.msra.mxu0 %v79
    %310 = vmatprep.subr.mxu0 0.0
    %311 = vmatpush2.msra.mxu0 %v78
    %312 = vmatprep.subr.mxu0 0.0
    %313 = vmatpush2.msra.mxu0 %v77
    %314 = vmatprep.subr.mxu0 0.0
    %315 = vmatpush2.msra.mxu0 %v76
    %316 = vmatprep.subr.mxu0 0.0
    %317 = vmatpush2.msra.mxu0 %v75
    %318 = vmatprep.subr.mxu0 0.0
    %319 = vmatpush2.msra.mxu0 %v74
    %320 = vmatprep.subr.mxu0 0.0
    %321 = vmatpush2.msra.mxu0 %v73
    %322 = vmatprep.subr.mxu0 0.0
    %323 = vmatpush2.msra.mxu0 %v72
    %324 = vmatprep.subr.mxu0 0.0
    %325 = vmatpush2.msra.mxu0 %v71
    %326 = vmatprep.subr.mxu0 0.0
    %327 = vmatpush2.msra.mxu0 %v70
    %328 = vmatprep.subr.mxu0 0.0
    %329 = vmatpush2.msra.mxu0 %v69
    %330 = vmatprep.subr.mxu0 0.0
    %331 = vmatpush2.msra.mxu0 %v68
    %332 = vmatprep.subr.mxu0 0.0
    %333 = vmatpush2.msra.mxu0 %v67
    %334 = vmatprep.subr.mxu0 0.0
    %335 = vmatpush2.msra.mxu0 %v66
    %336 = vmatprep.subr.mxu0 0.0
    %337 = vmatpush2.msra.mxu0 %v65
    %338 = vmatprep.subr.mxu0 0.0
    %339 = vmatpush2.msra.mxu0 %v64
    %340 = vmatprep.mubr.f32.mxu0 %v191
    %341 = vmatmul.mubr.f32.gmra.mxu0 %v189
    %v342 = vpop.f32.mrf.mxu0
    %v343 = vadd.f32 0.0, %v342
    %v344 = vpop.f32.mrf.mxu0
    %345 = vmatprep.mubr.f32.mxu0 %v197
    %346 = vmatmul.mubr.f32.gmra.mxu0 %v195
    %v347 = vpop.f32.mrf.mxu0
    %v348 = vadd.f32 0.0, %v347
    %v349 = vpop.f32.mrf.mxu0
    %350 = vdwg.mxu0
    %351 = vmatprep.subr.mxu0 0.0
    %352 = vmatpush1.msra.mxu0 %v95
    %353 = vmatprep.subr.mxu0 0.0
    %354 = vmatpush1.msra.mxu0 %v94
    %355 = vmatprep.subr.mxu0 0.0
    %356 = vmatpush1.msra.mxu0 %v93
    %357 = vmatprep.subr.mxu0 0.0
    %358 = vmatpush1.msra.mxu0 %v92
    %359 = vmatprep.subr.mxu0 0.0
    %360 = vmatpush1.msra.mxu0 %v91
    %361 = vmatprep.subr.mxu0 0.0
    %362 = vmatpush1.msra.mxu0 %v90
    %363 = vmatprep.subr.mxu0 0.0
    %364 = vmatpush1.msra.mxu0 %v89
    %365 = vmatprep.subr.mxu0 0.0
    %366 = vmatpush1.msra.mxu0 %v88
    %367 = vmatprep.subr.mxu0 0.0
    %368 = vmatpush1.msra.mxu0 %v87
    %369 = vmatprep.subr.mxu0 0.0
    %370 = vmatpush1.msra.mxu0 %v86
    %371 = vmatprep.subr.mxu0 0.0
    %372 = vmatpush1.msra.mxu0 %v85
    %373 = vmatprep.subr.mxu0 0.0
    %374 = vmatpush1.msra.mxu0 %v84
    %375 = vmatprep.subr.mxu0 0.0
    %376 = vmatpush1.msra.mxu0 %v83
    %377 = vmatprep.subr.mxu0 0.0
    %378 = vmatpush1.msra.mxu0 %v82
    %379 = vmatprep.subr.mxu0 0.0
    %380 = vmatpush1.msra.mxu0 %v81
    %381 = vmatprep.subr.mxu0 0.0
    %382 = vmatpush1.msra.mxu0 %v80
    %383 = vmatprep.subr.mxu0 0.0
    %384 = vmatpush2.msra.mxu0 %v111
    %385 = vmatprep.subr.mxu0 0.0
    %386 = vmatpush2.msra.mxu0 %v110
    %387 = vmatprep.subr.mxu0 0.0
    %388 = vmatpush2.msra.mxu0 %v109
    %389 = vmatprep.subr.mxu0 0.0
    %390 = vmatpush2.msra.mxu0 %v108
    %391 = vmatprep.subr.mxu0 0.0
    %392 = vmatpush2.msra.mxu0 %v107
    %393 = vmatprep.subr.mxu0 0.0
    %394 = vmatpush2.msra.mxu0 %v106
    %395 = vmatprep.subr.mxu0 0.0
    %396 = vmatpush2.msra.mxu0 %v105
    %397 = vmatprep.subr.mxu0 0.0
    %398 = vmatpush2.msra.mxu0 %v104
    %399 = vmatprep.subr.mxu0 0.0
    %400 = vmatpush2.msra.mxu0 %v103
    %401 = vmatprep.subr.mxu0 0.0
    %402 = vmatpush2.msra.mxu0 %v102
    %403 = vmatprep.subr.mxu0 0.0
    %404 = vmatpush2.msra.mxu0 %v101
    %405 = vmatprep.subr.mxu0 0.0
    %406 = vmatpush2.msra.mxu0 %v100
    %407 = vmatprep.subr.mxu0 0.0
    %408 = vmatpush2.msra.mxu0 %v99
    %409 = vmatprep.subr.mxu0 0.0
    %410 = vmatpush2.msra.mxu0 %v98
    %411 = vmatprep.subr.mxu0 0.0
    %412 = vmatpush2.msra.mxu0 %v97
    %413 = vmatprep.subr.mxu0 0.0
    %414 = vmatpush2.msra.mxu0 %v96
    %415 = vmatprep.mubr.f32.mxu0 %v268
    %416 = vmatmul.mubr.f32.gmra.mxu0 %v266
    %v417 = vpop.f32.mrf.mxu0
    %v418 = vadd.f32 %v343, %v417
    %v419 = vpop.f32.mrf.mxu0
    %420 = vmatprep.mubr.f32.mxu0 %v274
    %421 = vmatmul.mubr.f32.gmra.mxu0 %v272
    %v422 = vpop.f32.mrf.mxu0
    %v423 = vadd.f32 %v348, %v422
    %v424 = vpop.f32.mrf.mxu0
    %425 = vdwg.mxu0
    %v428 = vcombine.high %v112, %v112
    %v429 = vcombine.high %v113, %v113
    %432 = vmatprep.subr.mxu0 0.0
    %433 = vmatpush1.xpose.msra.mxu0 0.0
    %434 = vmatprep.subr.mxu0 0.0
    %435 = vmatpush1.xpose.msra.mxu0 0.0
    %436 = vmatprep.subr.mxu0 0.0
    %437 = vmatpush1.xpose.msra.mxu0 0.0
    %438 = vmatprep.subr.mxu0 0.0
    %439 = vmatpush1.xpose.msra.mxu0 0.0
    %440 = vmatprep.subr.mxu0 0.0
    %441 = vmatpush1.xpose.msra.mxu0 0.0
    %442 = vmatprep.subr.mxu0 0.0
    %443 = vmatpush1.xpose.msra.mxu0 0.0
    %444 = vmatprep.subr.mxu0 0.0
    %445 = vmatpush1.xpose.msra.mxu0 0.0
    %446 = vmatprep.subr.mxu0 0.0
    %447 = vmatpush1.xpose.msra.mxu0 0.0
    %448 = vmatprep.subr.mxu0 0.0
    %449 = vmatpush1.xpose.msra.mxu0 0.0
    %450 = vmatprep.subr.mxu0 0.0
    %451 = vmatpush1.xpose.msra.mxu0 0.0
    %452 = vmatprep.subr.mxu0 0.0
    %453 = vmatpush1.xpose.msra.mxu0 0.0
    %454 = vmatprep.subr.mxu0 0.0
    %455 = vmatpush1.xpose.msra.mxu0 0.0
    %456 = vmatprep.subr.mxu0 0.0
    %457 = vmatpush1.xpose.msra.mxu0 0.0
    %458 = vmatprep.subr.mxu0 0.0
    %459 = vmatpush1.xpose.msra.mxu0 0.0
    %460 = vmatprep.subr.mxu0 %v197
    %461 = vmatpush1.xpose.msra.mxu0 %v195
    %462 = vmatprep.subr.mxu0 %v191
    %463 = vmatpush1.xpose.msra.mxu0 %v189
    %464 = vmatprep.subr.mxu0 0.0
    %465 = vmatpush2.xpose.msra.mxu0 0.0
    %466 = vmatprep.subr.mxu0 0.0
    %467 = vmatpush2.xpose.msra.mxu0 0.0
    %468 = vmatprep.subr.mxu0 0.0
    %469 = vmatpush2.xpose.msra.mxu0 0.0
    %470 = vmatprep.subr.mxu0 0.0
    %471 = vmatpush2.xpose.msra.mxu0 0.0
    %472 = vmatprep.subr.mxu0 0.0
    %473 = vmatpush2.xpose.msra.mxu0 0.0
    %474 = vmatprep.subr.mxu0 0.0
    %475 = vmatpush2.xpose.msra.mxu0 0.0
    %476 = vmatprep.subr.mxu0 0.0
    %477 = vmatpush2.xpose.msra.mxu0 0.0
    %478 = vmatprep.subr.mxu0 0.0
    %479 = vmatpush2.xpose.msra.mxu0 0.0
    %480 = vmatprep.subr.mxu0 0.0
    %481 = vmatpush2.xpose.msra.mxu0 0.0
    %482 = vmatprep.subr.mxu0 0.0
    %483 = vmatpush2.xpose.msra.mxu0 0.0
    %484 = vmatprep.subr.mxu0 0.0
    %485 = vmatpush2.xpose.msra.mxu0 0.0
    %486 = vmatprep.subr.mxu0 0.0
    %487 = vmatpush2.xpose.msra.mxu0 0.0
    %488 = vmatprep.subr.mxu0 0.0
    %489 = vmatpush2.xpose.msra.mxu0 0.0
    %490 = vmatprep.subr.mxu0 0.0
    %491 = vmatpush2.xpose.msra.mxu0 0.0
    %492 = vmatprep.subr.mxu0 0.0
    %493 = vmatpush2.xpose.msra.mxu0 0.0
    %494 = vmatprep.subr.mxu0 0.0
    %495 = vmatpush2.xpose.msra.mxu0 0.0
    %496 = vmatprep.mubr.f32.mxu0 %v428
    %497 = vmatmul.mubr.f32.gmra.mxu0 %v112
    %v498 = vpop.f32.mrf.mxu0
    %v499 = vadd.f32 0.0, %v498
    %v500 = vpop.f32.mrf.mxu0
    %501 = vdwg.mxu0
    %502 = vmatprep.subr.mxu0 0.0
    %503 = vmatpush1.xpose.msra.mxu0 0.0
    %504 = vmatprep.subr.mxu0 0.0
    %505 = vmatpush1.xpose.msra.mxu0 0.0
    %506 = vmatprep.subr.mxu0 0.0
    %507 = vmatpush1.xpose.msra.mxu0 0.0
    %508 = vmatprep.subr.mxu0 0.0
    %509 = vmatpush1.xpose.msra.mxu0 0.0
    %510 = vmatprep.subr.mxu0 0.0
    %511 = vmatpush1.xpose.msra.mxu0 0.0
    %512 = vmatprep.subr.mxu0 0.0
    %513 = vmatpush1.xpose.msra.mxu0 0.0
    %514 = vmatprep.subr.mxu0 0.0
    %515 = vmatpush1.xpose.msra.mxu0 0.0
    %516 = vmatprep.subr.mxu0 0.0
    %517 = vmatpush1.xpose.msra.mxu0 0.0
    %518 = vmatprep.subr.mxu0 0.0
    %519 = vmatpush1.xpose.msra.mxu0 0.0
    %520 = vmatprep.subr.mxu0 0.0
    %521 = vmatpush1.xpose.msra.mxu0 0.0
    %522 = vmatprep.subr.mxu0 0.0
    %523 = vmatpush1.xpose.msra.mxu0 0.0
    %524 = vmatprep.subr.mxu0 0.0
    %525 = vmatpush1.xpose.msra.mxu0 0.0
    %526 = vmatprep.subr.mxu0 0.0
    %527 = vmatpush1.xpose.msra.mxu0 0.0
    %528 = vmatprep.subr.mxu0 0.0
    %529 = vmatpush1.xpose.msra.mxu0 0.0
    %530 = vmatprep.subr.mxu0 %v274
    %531 = vmatpush1.xpose.msra.mxu0 %v272
    %532 = vmatprep.subr.mxu0 %v268
    %533 = vmatpush1.xpose.msra.mxu0 %v266
    %534 = vmatprep.subr.mxu0 0.0
    %535 = vmatpush2.xpose.msra.mxu0 0.0
    %536 = vmatprep.subr.mxu0 0.0
    %537 = vmatpush2.xpose.msra.mxu0 0.0
    %538 = vmatprep.subr.mxu0 0.0
    %539 = vmatpush2.xpose.msra.mxu0 0.0
    %540 = vmatprep.subr.mxu0 0.0
    %541 = vmatpush2.xpose.msra.mxu0 0.0
    %542 = vmatprep.subr.mxu0 0.0
    %543 = vmatpush2.xpose.msra.mxu0 0.0
    %544 = vmatprep.subr.mxu0 0.0
    %545 = vmatpush2.xpose.msra.mxu0 0.0
    %546 = vmatprep.subr.mxu0 0.0
    %547 = vmatpush2.xpose.msra.mxu0 0.0
    %548 = vmatprep.subr.mxu0 0.0
    %549 = vmatpush2.xpose.msra.mxu0 0.0
    %550 = vmatprep.subr.mxu0 0.0
    %551 = vmatpush2.xpose.msra.mxu0 0.0
    %552 = vmatprep.subr.mxu0 0.0
    %553 = vmatpush2.xpose.msra.mxu0 0.0
    %554 = vmatprep.subr.mxu0 0.0
    %555 = vmatpush2.xpose.msra.mxu0 0.0
    %556 = vmatprep.subr.mxu0 0.0
    %557 = vmatpush2.xpose.msra.mxu0 0.0
    %558 = vmatprep.subr.mxu0 0.0
    %559 = vmatpush2.xpose.msra.mxu0 0.0
    %560 = vmatprep.subr.mxu0 0.0
    %561 = vmatpush2.xpose.msra.mxu0 0.0
    %562 = vmatprep.subr.mxu0 0.0
    %563 = vmatpush2.xpose.msra.mxu0 0.0
    %564 = vmatprep.subr.mxu0 0.0
    %565 = vmatpush2.xpose.msra.mxu0 0.0
    %566 = vmatprep.mubr.f32.mxu0 %v429
    %567 = vmatmul.mubr.f32.gmra.mxu0 %v113
    %v568 = vpop.f32.mrf.mxu0
    %v569 = vadd.f32 %v499, %v568
    %v570 = vpop.f32.mrf.mxu0
    %571 = vdwg.mxu0
    %573 = vset.pattern.permute.xlu0 0
    %574 = vperm.xlu0 %573, %v418
    %v575 = vpop.permute.xlu0 %574
    %578 = vset.pattern.permute.xlu0 0
    %579 = vperm.xlu0 %578, %v423
    %v580 = vpop.permute.xlu0 %579
    %v582 = vlaneseq
    %v583 = vshrl.u32 %v582, 7
    %v584 = vsub.s32 0, %v583
    %v585 = vrot.slane %v569, %v584
    %v586 = vadd.f32 %v575, %v585
    %v587 = vadd.f32 %v580, %v585
    %vm588 = vcmp.gt.f32.partialorder %v586, 0.0
    %vm589 = vcmp.gt.f32.partialorder %v587, 0.0
    %v590 = vmul.f32 %v586, 0.2
    %v591 = vmul.f32 %v587, 0.2
    %v592 = vsel %vm588, %v586, %v590
    %v593 = vsel %vm589, %v587, %v591
    %v594 = vadd.f32 %v592, %v40
    %v595 = vadd.f32 %v593, %v41
    %vm596 = vcmask 130048
    %v597 = vsel %vm596, %v594, -inf
    %598 = vmax.xlane.f32.xlu0 %v597
    %v599 = vpop.xlane.xlu0 %598
    %v600 = vsel %vm596, %v595, -inf
    %601 = vmax.xlane.f32.xlu0 %v600
    %v602 = vpop.xlane.xlu0 %601
    %v603 = vsub.f32 %v594, %v599
    %v604 = vsub.f32 %v595, %v602
    %v605 = vmul.f32 %v603, 1.442695
    %v606 = vpow.pop %v605
    %v607 = vmul.f32 %v604, 1.442695
    %v608 = vpow.pop %v607
    %v609 = vsel %vm596, %v606, 0.0
    %610 = vadd.xlane.f32.xlu0 %v609
    %v611 = vpop.xlane.xlu0 %610
    %v612 = vsel %vm596, %v608, 0.0
    %613 = vadd.xlane.f32.xlu0 %v612
    %v614 = vpop.xlane.xlu0 %613
    %v615 = vmul.f32 %v611, 4.0
    %v616 = vmul.f32 %v614, 4.0
    %v617 = vrcp.pop %v615
    %v618 = vrcp.pop %v616
    %v619 = vmul.f32 %v606, %v617
    %v620 = vmul.f32 %v608, %v618
    %621 = vset.pattern.permute.xlu0 1
    %622 = vperm.xlu0 %621, %v418
    %v623 = vpop.permute.xlu0 %622
    %625 = vset.pattern.permute.xlu0 1
    %626 = vperm.xlu0 %625, %v423
    %v627 = vpop.permute.xlu0 %626
    %v629 = vlaneseq
    %v630 = vshrl.u32 %v629, 7
    %v631 = vsub.s32 1, %v630
    %v632 = vrot.slane %v569, %v631
    %v633 = vadd.f32 %v623, %v632
    %v634 = vadd.f32 %v627, %v632
    %vm635 = vcmp.gt.f32.partialorder %v633, 0.0
    %vm636 = vcmp.gt.f32.partialorder %v634, 0.0
    %v637 = vmul.f32 %v633, 0.2
    %v638 = vmul.f32 %v634, 0.2
    %v639 = vsel %vm635, %v633, %v637
    %v640 = vsel %vm636, %v634, %v638
    %v641 = vadd.f32 %v639, %v40
    %v642 = vadd.f32 %v640, %v41
    %v643 = vsel %vm596, %v641, -inf
    %644 = vmax.xlane.f32.xlu0 %v643
    %v645 = vpop.xlane.xlu0 %644
    %v646 = vsel %vm596, %v642, -inf
    %647 = vmax.xlane.f32.xlu0 %v646
    %v648 = vpop.xlane.xlu0 %647
    %v649 = vsub.f32 %v641, %v645
    %v650 = vsub.f32 %v642, %v648
    %v651 = vmul.f32 %v649, 1.442695
    %v652 = vpow.pop %v651
    %v653 = vmul.f32 %v650, 1.442695
    %v654 = vpow.pop %v653
    %v655 = vsel %vm596, %v652, 0.0
    %656 = vadd.xlane.f32.xlu0 %v655
    %v657 = vpop.xlane.xlu0 %656
    %v658 = vsel %vm596, %v654, 0.0
    %659 = vadd.xlane.f32.xlu0 %v658
    %v660 = vpop.xlane.xlu0 %659
    %v661 = vmul.f32 %v657, 4.0
    %v662 = vmul.f32 %v660, 4.0
    %v663 = vrcp.pop %v661
    %v664 = vrcp.pop %v662
    %v665 = vmul.f32 %v652, %v663
    %v666 = vmul.f32 %v654, %v664
    %v668 = vsel %vm596, %v665, 0
    %v671 = vsel %vm596, %v666, 0
    %673 = vmatprep.subr.mxu0 0.0
    %674 = vmatpush1.msra.mxu0 0.0
    %675 = vmatprep.subr.mxu0 0.0
    %676 = vmatpush1.msra.mxu0 0.0
    %677 = vmatprep.subr.mxu0 0.0
    %678 = vmatpush1.msra.mxu0 0.0
    %679 = vmatprep.subr.mxu0 0.0
    %680 = vmatpush1.msra.mxu0 0.0
    %681 = vmatprep.subr.mxu0 0.0
    %682 = vmatpush1.msra.mxu0 0.0
    %683 = vmatprep.subr.mxu0 0.0
    %684 = vmatpush1.msra.mxu0 0.0
    %685 = vmatprep.subr.mxu0 0.0
    %686 = vmatpush1.msra.mxu0 0.0
    %687 = vmatprep.subr.mxu0 0.0
    %688 = vmatpush1.msra.mxu0 0.0
    %689 = vmatprep.subr.mxu0 0.0
    %690 = vmatpush1.msra.mxu0 0.0
    %691 = vmatprep.subr.mxu0 0.0
    %692 = vmatpush1.msra.mxu0 0.0
    %693 = vmatprep.subr.mxu0 0.0
    %694 = vmatpush1.msra.mxu0 0.0
    %695 = vmatprep.subr.mxu0 0.0
    %696 = vmatpush1.msra.mxu0 0.0
    %697 = vmatprep.subr.mxu0 0.0
    %698 = vmatpush1.msra.mxu0 0.0
    %699 = vmatprep.subr.mxu0 0.0
    %700 = vmatpush1.msra.mxu0 0.0
    %701 = vmatprep.subr.mxu0 0.0
    %702 = vmatpush1.msra.mxu0 %v197
    %703 = vmatprep.subr.mxu0 0.0
    %704 = vmatpush1.msra.mxu0 %v191
    %705 = vmatprep.subr.mxu0 0.0
    %706 = vmatpush2.msra.mxu0 0.0
    %707 = vmatprep.subr.mxu0 0.0
    %708 = vmatpush2.msra.mxu0 0.0
    %709 = vmatprep.subr.mxu0 0.0
    %710 = vmatpush2.msra.mxu0 0.0
    %711 = vmatprep.subr.mxu0 0.0
    %712 = vmatpush2.msra.mxu0 0.0
    %713 = vmatprep.subr.mxu0 0.0
    %714 = vmatpush2.msra.mxu0 0.0
    %715 = vmatprep.subr.mxu0 0.0
    %716 = vmatpush2.msra.mxu0 0.0
    %717 = vmatprep.subr.mxu0 0.0
    %718 = vmatpush2.msra.mxu0 0.0
    %719 = vmatprep.subr.mxu0 0.0
    %720 = vmatpush2.msra.mxu0 0.0
    %721 = vmatprep.subr.mxu0 0.0
    %722 = vmatpush2.msra.mxu0 0.0
    %723 = vmatprep.subr.mxu0 0.0
    %724 = vmatpush2.msra.mxu0 0.0
    %725 = vmatprep.subr.mxu0 0.0
    %726 = vmatpush2.msra.mxu0 0.0
    %727 = vmatprep.subr.mxu0 0.0
    %728 = vmatpush2.msra.mxu0 0.0
    %729 = vmatprep.subr.mxu0 0.0
    %730 = vmatpush2.msra.mxu0 0.0
    %731 = vmatprep.subr.mxu0 0.0
    %732 = vmatpush2.msra.mxu0 0.0
    %733 = vmatprep.subr.mxu0 0.0
    %734 = vmatpush2.msra.mxu0 0.0
    %735 = vmatprep.subr.mxu0 0.0
    %736 = vmatpush2.msra.mxu0 0.0
    %737 = vmatprep.mubr.f32.mxu0 0.0
    %738 = vmatmul.mubr.f32.gmra.mxu0 %v668
    %v739 = vpop.f32.mrf.mxu0
    %v740 = vadd.f32 0.0, %v739
    %v741 = vpop.f32.mrf.mxu0
    %742 = vmatprep.mubr.f32.mxu0 0.0
    %743 = vmatmul.mubr.f32.gmra.mxu0 %v671
    %v744 = vpop.f32.mrf.mxu0
    %v745 = vadd.f32 0.0, %v744
    %v746 = vpop.f32.mrf.mxu0
    %747 = vdwg.mxu0
    %v749 = vsel %vm596, %v619, 0
    %v752 = vsel %vm596, %v620, 0
    %754 = vmatprep.subr.mxu0 0.0
    %755 = vmatpush1.msra.mxu0 0.0
    %756 = vmatprep.subr.mxu0 0.0
    %757 = vmatpush1.msra.mxu0 0.0
    %758 = vmatprep.subr.mxu0 0.0
    %759 = vmatpush1.msra.mxu0 0.0
    %760 = vmatprep.subr.mxu0 0.0
    %761 = vmatpush1.msra.mxu0 0.0
    %762 = vmatprep.subr.mxu0 0.0
    %763 = vmatpush1.msra.mxu0 0.0
    %764 = vmatprep.subr.mxu0 0.0
    %765 = vmatpush1.msra.mxu0 0.0
    %766 = vmatprep.subr.mxu0 0.0
    %767 = vmatpush1.msra.mxu0 0.0
    %768 = vmatprep.subr.mxu0 0.0
    %769 = vmatpush1.msra.mxu0 0.0
    %770 = vmatprep.subr.mxu0 0.0
    %771 = vmatpush1.msra.mxu0 0.0
    %772 = vmatprep.subr.mxu0 0.0
    %773 = vmatpush1.msra.mxu0 0.0
    %774 = vmatprep.subr.mxu0 0.0
    %775 = vmatpush1.msra.mxu0 0.0
    %776 = vmatprep.subr.mxu0 0.0
    %777 = vmatpush1.msra.mxu0 0.0
    %778 = vmatprep.subr.mxu0 0.0
    %779 = vmatpush1.msra.mxu0 0.0
    %780 = vmatprep.subr.mxu0 0.0
    %781 = vmatpush1.msra.mxu0 0.0
    %782 = vmatprep.subr.mxu0 0.0
    %783 = vmatpush1.msra.mxu0 %v195
    %784 = vmatprep.subr.mxu0 0.0
    %785 = vmatpush1.msra.mxu0 %v189
    %786 = vmatprep.subr.mxu0 0.0
    %787 = vmatpush2.msra.mxu0 0.0
    %788 = vmatprep.subr.mxu0 0.0
    %789 = vmatpush2.msra.mxu0 0.0
    %790 = vmatprep.subr.mxu0 0.0
    %791 = vmatpush2.msra.mxu0 0.0
    %792 = vmatprep.subr.mxu0 0.0
    %793 = vmatpush2.msra.mxu0 0.0
    %794 = vmatprep.subr.mxu0 0.0
    %795 = vmatpush2.msra.mxu0 0.0
    %796 = vmatprep.subr.mxu0 0.0
    %797 = vmatpush2.msra.mxu0 0.0
    %798 = vmatprep.subr.mxu0 0.0
    %799 = vmatpush2.msra.mxu0 0.0
    %800 = vmatprep.subr.mxu0 0.0
    %801 = vmatpush2.msra.mxu0 0.0
    %802 = vmatprep.subr.mxu0 0.0
    %803 = vmatpush2.msra.mxu0 0.0
    %804 = vmatprep.subr.mxu0 0.0
    %805 = vmatpush2.msra.mxu0 0.0
    %806 = vmatprep.subr.mxu0 0.0
    %807 = vmatpush2.msra.mxu0 0.0
    %808 = vmatprep.subr.mxu0 0.0
    %809 = vmatpush2.msra.mxu0 0.0
    %810 = vmatprep.subr.mxu0 0.0
    %811 = vmatpush2.msra.mxu0 0.0
    %812 = vmatprep.subr.mxu0 0.0
    %813 = vmatpush2.msra.mxu0 0.0
    %814 = vmatprep.subr.mxu0 0.0
    %815 = vmatpush2.msra.mxu0 0.0
    %816 = vmatprep.subr.mxu0 0.0
    %817 = vmatpush2.msra.mxu0 0.0
    %818 = vmatprep.mubr.f32.mxu0 0.0
    %819 = vmatmul.mubr.f32.gmra.mxu0 %v749
    %v820 = vpop.f32.mrf.mxu0
    %v821 = vadd.f32 %v740, %v820
    %v822 = vpop.f32.mrf.mxu0
    %823 = vmatprep.mubr.f32.mxu0 0.0
    %824 = vmatmul.mubr.f32.gmra.mxu0 %v752
    %v825 = vpop.f32.mrf.mxu0
    %v826 = vadd.f32 %v745, %v825
    %v827 = vpop.f32.mrf.mxu0
    %828 = vdwg.mxu0
    %829 = vset.pattern.permute.xlu0 2
    %830 = vperm.xlu0 %829, %v418
    %v831 = vpop.permute.xlu0 %830
    %833 = vset.pattern.permute.xlu0 2
    %834 = vperm.xlu0 %833, %v423
    %v835 = vpop.permute.xlu0 %834
    %v837 = vlaneseq
    %v838 = vshrl.u32 %v837, 7
    %v839 = vsub.s32 2, %v838
    %v840 = vrot.slane %v569, %v839
    %v841 = vadd.f32 %v831, %v840
    %v842 = vadd.f32 %v835, %v840
    %vm843 = vcmp.gt.f32.partialorder %v841, 0.0
    %vm844 = vcmp.gt.f32.partialorder %v842, 0.0
    %v845 = vmul.f32 %v841, 0.2
    %v846 = vmul.f32 %v842, 0.2
    %v847 = vsel %vm843, %v841, %v845
    %v848 = vsel %vm844, %v842, %v846
    %v849 = vadd.f32 %v847, %v40
    %v850 = vadd.f32 %v848, %v41
    %v851 = vsel %vm596, %v849, -inf
    %852 = vmax.xlane.f32.xlu0 %v851
    %v853 = vpop.xlane.xlu0 %852
    %v854 = vsel %vm596, %v850, -inf
    %855 = vmax.xlane.f32.xlu0 %v854
    %v856 = vpop.xlane.xlu0 %855
    %v857 = vsub.f32 %v849, %v853
    %v858 = vsub.f32 %v850, %v856
    %v859 = vmul.f32 %v857, 1.442695
    %v860 = vpow.pop %v859
    %v861 = vmul.f32 %v858, 1.442695
    %v862 = vpow.pop %v861
    %v863 = vsel %vm596, %v860, 0.0
    %864 = vadd.xlane.f32.xlu0 %v863
    %v865 = vpop.xlane.xlu0 %864
    %v866 = vsel %vm596, %v862, 0.0
    %867 = vadd.xlane.f32.xlu0 %v866
    %v868 = vpop.xlane.xlu0 %867
    %v869 = vmul.f32 %v865, 4.0
    %v870 = vmul.f32 %v868, 4.0
    %v871 = vrcp.pop %v869
    %v872 = vrcp.pop %v870
    %v873 = vmul.f32 %v860, %v871
    %v874 = vmul.f32 %v862, %v872
    %v876 = vsel %vm596, %v873, 0
    %v879 = vsel %vm596, %v874, 0
    %881 = vmatprep.subr.mxu0 0.0
    %882 = vmatpush1.msra.mxu0 0.0
    %883 = vmatprep.subr.mxu0 0.0
    %884 = vmatpush1.msra.mxu0 0.0
    %885 = vmatprep.subr.mxu0 0.0
    %886 = vmatpush1.msra.mxu0 0.0
    %887 = vmatprep.subr.mxu0 0.0
    %888 = vmatpush1.msra.mxu0 0.0
    %889 = vmatprep.subr.mxu0 0.0
    %890 = vmatpush1.msra.mxu0 0.0
    %891 = vmatprep.subr.mxu0 0.0
    %892 = vmatpush1.msra.mxu0 0.0
    %893 = vmatprep.subr.mxu0 0.0
    %894 = vmatpush1.msra.mxu0 0.0
    %895 = vmatprep.subr.mxu0 0.0
    %896 = vmatpush1.msra.mxu0 0.0
    %897 = vmatprep.subr.mxu0 0.0
    %898 = vmatpush1.msra.mxu0 0.0
    %899 = vmatprep.subr.mxu0 0.0
    %900 = vmatpush1.msra.mxu0 0.0
    %901 = vmatprep.subr.mxu0 0.0
    %902 = vmatpush1.msra.mxu0 0.0
    %903 = vmatprep.subr.mxu0 0.0
    %904 = vmatpush1.msra.mxu0 0.0
    %905 = vmatprep.subr.mxu0 0.0
    %906 = vmatpush1.msra.mxu0 0.0
    %907 = vmatprep.subr.mxu0 0.0
    %908 = vmatpush1.msra.mxu0 0.0
    %909 = vmatprep.subr.mxu0 0.0
    %910 = vmatpush1.msra.mxu0 %v272
    %911 = vmatprep.subr.mxu0 0.0
    %912 = vmatpush1.msra.mxu0 %v266
    %913 = vmatprep.subr.mxu0 0.0
    %914 = vmatpush2.msra.mxu0 0.0
    %915 = vmatprep.subr.mxu0 0.0
    %916 = vmatpush2.msra.mxu0 0.0
    %917 = vmatprep.subr.mxu0 0.0
    %918 = vmatpush2.msra.mxu0 0.0
    %919 = vmatprep.subr.mxu0 0.0
    %920 = vmatpush2.msra.mxu0 0.0
    %921 = vmatprep.subr.mxu0 0.0
    %922 = vmatpush2.msra.mxu0 0.0
    %923 = vmatprep.subr.mxu0 0.0
    %924 = vmatpush2.msra.mxu0 0.0
    %925 = vmatprep.subr.mxu0 0.0
    %926 = vmatpush2.msra.mxu0 0.0
    %927 = vmatprep.subr.mxu0 0.0
    %928 = vmatpush2.msra.mxu0 0.0
    %929 = vmatprep.subr.mxu0 0.0
    %930 = vmatpush2.msra.mxu0 0.0
    %931 = vmatprep.subr.mxu0 0.0
    %932 = vmatpush2.msra.mxu0 0.0
    %933 = vmatprep.subr.mxu0 0.0
    %934 = vmatpush2.msra.mxu0 0.0
    %935 = vmatprep.subr.mxu0 0.0
    %936 = vmatpush2.msra.mxu0 0.0
    %937 = vmatprep.subr.mxu0 0.0
    %938 = vmatpush2.msra.mxu0 0.0
    %939 = vmatprep.subr.mxu0 0.0
    %940 = vmatpush2.msra.mxu0 0.0
    %941 = vmatprep.subr.mxu0 0.0
    %942 = vmatpush2.msra.mxu0 0.0
    %943 = vmatprep.subr.mxu0 0.0
    %944 = vmatpush2.msra.mxu0 0.0
    %945 = vmatprep.mubr.f32.mxu0 0.0
    %946 = vmatmul.mubr.f32.gmra.mxu0 %v876
    %v947 = vpop.f32.mrf.mxu0
    %v948 = vadd.f32 0.0, %v947
    %v949 = vpop.f32.mrf.mxu0
    %950 = vmatprep.mubr.f32.mxu0 0.0
    %951 = vmatmul.mubr.f32.gmra.mxu0 %v879
    %v952 = vpop.f32.mrf.mxu0
    %v953 = vadd.f32 0.0, %v952
    %v954 = vpop.f32.mrf.mxu0
    %955 = vdwg.mxu0
    %v956 = vadd.f32 %v821, %v948
    %v957 = vadd.f32 %v826, %v953
    %958 = vset.pattern.permute.xlu0 3
    %959 = vperm.xlu0 %958, %v418
    %v960 = vpop.permute.xlu0 %959
    %962 = vset.pattern.permute.xlu0 3
    %963 = vperm.xlu0 %962, %v423
    %v964 = vpop.permute.xlu0 %963
    %v966 = vlaneseq
    %v967 = vshrl.u32 %v966, 7
    %v968 = vsub.s32 3, %v967
    %v969 = vrot.slane %v569, %v968
    %v970 = vadd.f32 %v960, %v969
    %v971 = vadd.f32 %v964, %v969
    %vm972 = vcmp.gt.f32.partialorder %v970, 0.0
    %vm973 = vcmp.gt.f32.partialorder %v971, 0.0
    %v974 = vmul.f32 %v970, 0.2
    %v975 = vmul.f32 %v971, 0.2
    %v976 = vsel %vm972, %v970, %v974
    %v977 = vsel %vm973, %v971, %v975
    %v978 = vadd.f32 %v976, %v40
    %v979 = vadd.f32 %v977, %v41
    %v980 = vsel %vm596, %v978, -inf
    %981 = vmax.xlane.f32.xlu0 %v980
    %v982 = vpop.xlane.xlu0 %981
    %v983 = vsel %vm596, %v979, -inf
    %984 = vmax.xlane.f32.xlu0 %v983
    %v985 = vpop.xlane.xlu0 %984
    %v986 = vsub.f32 %v978, %v982
    %v987 = vsub.f32 %v979, %v985
    %v988 = vmul.f32 %v986, 1.442695
    %v989 = vpow.pop %v988
    %v990 = vmul.f32 %v987, 1.442695
    %v991 = vpow.pop %v990
    %v992 = vsel %vm596, %v989, 0.0
    %993 = vadd.xlane.f32.xlu0 %v992
    %v994 = vpop.xlane.xlu0 %993
    %v995 = vsel %vm596, %v991, 0.0
    %996 = vadd.xlane.f32.xlu0 %v995
    %v997 = vpop.xlane.xlu0 %996
    %v998 = vmul.f32 %v994, 4.0
    %v999 = vmul.f32 %v997, 4.0
    %v1000 = vrcp.pop %v998
    %v1001 = vrcp.pop %v999
    %v1002 = vmul.f32 %v989, %v1000
    %v1003 = vmul.f32 %v991, %v1001
    %v1005 = vsel %vm596, %v1002, 0
    %v1008 = vsel %vm596, %v1003, 0
    %1010 = vmatprep.subr.mxu0 0.0
    %1011 = vmatpush1.msra.mxu0 0.0
    %1012 = vmatprep.subr.mxu0 0.0
    %1013 = vmatpush1.msra.mxu0 0.0
    %1014 = vmatprep.subr.mxu0 0.0
    %1015 = vmatpush1.msra.mxu0 0.0
    %1016 = vmatprep.subr.mxu0 0.0
    %1017 = vmatpush1.msra.mxu0 0.0
    %1018 = vmatprep.subr.mxu0 0.0
    %1019 = vmatpush1.msra.mxu0 0.0
    %1020 = vmatprep.subr.mxu0 0.0
    %1021 = vmatpush1.msra.mxu0 0.0
    %1022 = vmatprep.subr.mxu0 0.0
    %1023 = vmatpush1.msra.mxu0 0.0
    %1024 = vmatprep.subr.mxu0 0.0
    %1025 = vmatpush1.msra.mxu0 0.0
    %1026 = vmatprep.subr.mxu0 0.0
    %1027 = vmatpush1.msra.mxu0 0.0
    %1028 = vmatprep.subr.mxu0 0.0
    %1029 = vmatpush1.msra.mxu0 0.0
    %1030 = vmatprep.subr.mxu0 0.0
    %1031 = vmatpush1.msra.mxu0 0.0
    %1032 = vmatprep.subr.mxu0 0.0
    %1033 = vmatpush1.msra.mxu0 0.0
    %1034 = vmatprep.subr.mxu0 0.0
    %1035 = vmatpush1.msra.mxu0 0.0
    %1036 = vmatprep.subr.mxu0 0.0
    %1037 = vmatpush1.msra.mxu0 0.0
    %1038 = vmatprep.subr.mxu0 0.0
    %1039 = vmatpush1.msra.mxu0 %v274
    %1040 = vmatprep.subr.mxu0 0.0
    %1041 = vmatpush1.msra.mxu0 %v268
    %1042 = vmatprep.subr.mxu0 0.0
    %1043 = vmatpush2.msra.mxu0 0.0
    %1044 = vmatprep.subr.mxu0 0.0
    %1045 = vmatpush2.msra.mxu0 0.0
    %1046 = vmatprep.subr.mxu0 0.0
    %1047 = vmatpush2.msra.mxu0 0.0
    %1048 = vmatprep.subr.mxu0 0.0
    %1049 = vmatpush2.msra.mxu0 0.0
    %1050 = vmatprep.subr.mxu0 0.0
    %1051 = vmatpush2.msra.mxu0 0.0
    %1052 = vmatprep.subr.mxu0 0.0
    %1053 = vmatpush2.msra.mxu0 0.0
    %1054 = vmatprep.subr.mxu0 0.0
    %1055 = vmatpush2.msra.mxu0 0.0
    %1056 = vmatprep.subr.mxu0 0.0
    %1057 = vmatpush2.msra.mxu0 0.0
    %1058 = vmatprep.subr.mxu0 0.0
    %1059 = vmatpush2.msra.mxu0 0.0
    %1060 = vmatprep.subr.mxu0 0.0
    %1061 = vmatpush2.msra.mxu0 0.0
    %1062 = vmatprep.subr.mxu0 0.0
    %1063 = vmatpush2.msra.mxu0 0.0
    %1064 = vmatprep.subr.mxu0 0.0
    %1065 = vmatpush2.msra.mxu0 0.0
    %1066 = vmatprep.subr.mxu0 0.0
    %1067 = vmatpush2.msra.mxu0 0.0
    %1068 = vmatprep.subr.mxu0 0.0
    %1069 = vmatpush2.msra.mxu0 0.0
    %1070 = vmatprep.subr.mxu0 0.0
    %1071 = vmatpush2.msra.mxu0 0.0
    %1072 = vmatprep.subr.mxu0 0.0
    %1073 = vmatpush2.msra.mxu0 0.0
    %1074 = vmatprep.mubr.f32.mxu0 0.0
    %1075 = vmatmul.mubr.f32.gmra.mxu0 %v1005
    %v1076 = vpop.f32.mrf.mxu0
    %v1077 = vadd.f32 0.0, %v1076
    %v1078 = vpop.f32.mrf.mxu0
    %1079 = vmatprep.mubr.f32.mxu0 0.0
    %1080 = vmatmul.mubr.f32.gmra.mxu0 %v1008
    %v1081 = vpop.f32.mrf.mxu0
    %v1082 = vadd.f32 0.0, %v1081
    %v1083 = vpop.f32.mrf.mxu0
    %1084 = vdwg.mxu0
    %v1085 = vadd.f32 %v956, %v1077
    %v1086 = vadd.f32 %v957, %v1082
    %v1088 = vlaneseq
    %v1089 = vshrl.u32 %v1088, 7
    %v1090 = vsub.s32 0, %v1089
    %v1091 = vrot.slane %v114, %v1090
    %v1093 = vadd.f32 %v1085, %v1091
    %v1094 = vadd.f32 %v1086, %v1091
    %vm1095 = vcmp.gt.f32.partialorder %v1093, 0.0
    %vm1096 = vcmp.gt.f32.partialorder %v1094, 0.0
    %v1097 = vmul.f32 %v1093, 1.442695
    %v1098 = vpow.pop %v1097
    %v1099 = vmul.f32 %v1094, 1.442695
    %v1100 = vpow.pop %v1099
    %v1101 = vsub.f32 %v1098, 1.0
    %v1102 = vsub.f32 %v1100, 1.0
    %v1103 = vsel %vm1095, %v1093, %v1101
    %v1104 = vsel %vm1096, %v1094, %v1102
    %v1105 = vld [vmem:[%s6] sm:$0xff]
    %v1106 = vld [vmem:[%s6 + $0x8] sm:$0xff]
    %v1107 = vld [vmem:[%s6 + $0x10] sm:$0xff]
    %v1108 = vld [vmem:[%s6 + $0x18] sm:$0xff]
    %v1109 = vld [vmem:[%s6 + $0x20] sm:$0xff]
    %v1110 = vld [vmem:[%s6 + $0x28] sm:$0xff]
    %v1111 = vld [vmem:[%s6 + $0x30] sm:$0xff]
    %v1112 = vld [vmem:[%s6 + $0x38] sm:$0xff]
    %v1113 = vld [vmem:[%s6 + $0x40] sm:$0xff]
    %v1114 = vld [vmem:[%s6 + $0x48] sm:$0xff]
    %v1115 = vld [vmem:[%s6 + $0x50] sm:$0xff]
    %v1116 = vld [vmem:[%s6 + $0x58] sm:$0xff]
    %v1117 = vld [vmem:[%s6 + $0x60] sm:$0xff]
    %v1118 = vld [vmem:[%s6 + $0x68] sm:$0xff]
    %v1119 = vld [vmem:[%s6 + $0x70] sm:$0xff]
    %v1120 = vld [vmem:[%s6 + $0x78] sm:$0xff]
    %v1121 = vld [vmem:[%s6 + $0x80] sm:$0xff]
    %v1122 = vld [vmem:[%s6 + $0x88] sm:$0xff]
    %v1123 = vld [vmem:[%s6 + $0x90] sm:$0xff]
    %v1124 = vld [vmem:[%s6 + $0x98] sm:$0xff]
    %v1125 = vld [vmem:[%s6 + $0xa0] sm:$0xff]
    %v1126 = vld [vmem:[%s6 + $0xa8] sm:$0xff]
    %v1127 = vld [vmem:[%s6 + $0xb0] sm:$0xff]
    %v1128 = vld [vmem:[%s6 + $0xb8] sm:$0xff]
    %v1129 = vld [vmem:[%s6 + $0xc0] sm:$0xff]
    %v1130 = vld [vmem:[%s6 + $0xc8] sm:$0xff]
    %v1131 = vld [vmem:[%s6 + $0xd0] sm:$0xff]
    %v1132 = vld [vmem:[%s6 + $0xd8] sm:$0xff]
    %v1133 = vld [vmem:[%s6 + $0xe0] sm:$0xff]
    %v1134 = vld [vmem:[%s6 + $0xe8] sm:$0xff]
    %v1135 = vld [vmem:[%s6 + $0xf0] sm:$0xff]
    %v1136 = vld [vmem:[%s6 + $0xf8] sm:$0xff]
    %v1137 = vld [vmem:[%s6 + $0x100] sm:$0xff]
    %v1138 = vld [vmem:[%s6 + $0x108] sm:$0xff]
    %v1139 = vld [vmem:[%s6 + $0x110] sm:$0xff]
    %v1140 = vld [vmem:[%s6 + $0x118] sm:$0xff]
    %v1141 = vld [vmem:[%s6 + $0x120] sm:$0xff]
    %v1142 = vld [vmem:[%s6 + $0x128] sm:$0xff]
    %v1143 = vld [vmem:[%s6 + $0x130] sm:$0xff]
    %v1144 = vld [vmem:[%s6 + $0x138] sm:$0xff]
    %v1145 = vld [vmem:[%s6 + $0x140] sm:$0xff]
    %v1146 = vld [vmem:[%s6 + $0x148] sm:$0xff]
    %v1147 = vld [vmem:[%s6 + $0x150] sm:$0xff]
    %v1148 = vld [vmem:[%s6 + $0x158] sm:$0xff]
    %v1149 = vld [vmem:[%s6 + $0x160] sm:$0xff]
    %v1150 = vld [vmem:[%s6 + $0x168] sm:$0xff]
    %v1151 = vld [vmem:[%s6 + $0x170] sm:$0xff]
    %v1152 = vld [vmem:[%s6 + $0x178] sm:$0xff]
    %v1153 = vld [vmem:[%s6 + $0x180] sm:$0xff]
    %v1154 = vld [vmem:[%s6 + $0x188] sm:$0xff]
    %v1155 = vld [vmem:[%s6 + $0x190] sm:$0xff]
    %v1156 = vld [vmem:[%s6 + $0x198] sm:$0xff]
    %v1157 = vld [vmem:[%s6 + $0x1a0] sm:$0xff]
    %v1158 = vld [vmem:[%s6 + $0x1a8] sm:$0xff]
    %v1159 = vld [vmem:[%s6 + $0x1b0] sm:$0xff]
    %v1160 = vld [vmem:[%s6 + $0x1b8] sm:$0xff]
    %v1161 = vld [vmem:[%s6 + $0x1c0] sm:$0xff]
    %v1162 = vld [vmem:[%s6 + $0x1c8] sm:$0xff]
    %v1163 = vld [vmem:[%s6 + $0x1d0] sm:$0xff]
    %v1164 = vld [vmem:[%s6 + $0x1d8] sm:$0xff]
    %v1165 = vld [vmem:[%s6 + $0x1e0] sm:$0xff]
    %v1166 = vld [vmem:[%s6 + $0x1e8] sm:$0xff]
    %v1167 = vld [vmem:[%s6 + $0x1f0] sm:$0xff]
    %v1168 = vld [vmem:[%s6 + $0x1f8] sm:$0xff]
    %v1169 = vld [vmem:[%s7] sm:$0xff]
    %v1170 = vld [vmem:[%s7 + $0x8] sm:$0xff]
    %v1171 = vld [vmem:[%s7 + $0x10] sm:$0xff]
    %v1172 = vld [vmem:[%s7 + $0x18] sm:$0xff]
    %v1173 = vld [vmem:[%s7 + $0x20] sm:$0xff]
    %v1174 = vld [vmem:[%s7 + $0x28] sm:$0xff]
    %v1175 = vld [vmem:[%s7 + $0x30] sm:$0xff]
    %v1176 = vld [vmem:[%s7 + $0x38] sm:$0xff]
    %v1177 = vld [vmem:[%s7 + $0x40] sm:$0xff]
    %v1178 = vld [vmem:[%s7 + $0x48] sm:$0xff]
    %v1179 = vld [vmem:[%s7 + $0x50] sm:$0xff]
    %v1180 = vld [vmem:[%s7 + $0x58] sm:$0xff]
    %v1181 = vld [vmem:[%s7 + $0x60] sm:$0xff]
    %v1182 = vld [vmem:[%s7 + $0x68] sm:$0xff]
    %v1183 = vld [vmem:[%s7 + $0x70] sm:$0xff]
    %v1184 = vld [vmem:[%s7 + $0x78] sm:$0xff]
    %v1185 = vld [vmem:[%s7 + $0x80] sm:$0xff]
    %v1186 = vld [vmem:[%s7 + $0x88] sm:$0xff]
    %v1187 = vld [vmem:[%s7 + $0x90] sm:$0xff]
    %v1188 = vld [vmem:[%s7 + $0x98] sm:$0xff]
    %v1189 = vld [vmem:[%s7 + $0xa0] sm:$0xff]
    %v1190 = vld [vmem:[%s7 + $0xa8] sm:$0xff]
    %v1191 = vld [vmem:[%s7 + $0xb0] sm:$0xff]
    %v1192 = vld [vmem:[%s7 + $0xb8] sm:$0xff]
    %v1193 = vld [vmem:[%s7 + $0xc0] sm:$0xff]
    %v1194 = vld [vmem:[%s7 + $0xc8] sm:$0xff]
    %v1195 = vld [vmem:[%s7 + $0xd0] sm:$0xff]
    %v1196 = vld [vmem:[%s7 + $0xd8] sm:$0xff]
    %v1197 = vld [vmem:[%s7 + $0xe0] sm:$0xff]
    %v1198 = vld [vmem:[%s7 + $0xe8] sm:$0xff]
    %v1199 = vld [vmem:[%s7 + $0xf0] sm:$0xff]
    %v1200 = vld [vmem:[%s7 + $0xf8] sm:$0xff]
    %v1201 = vld [vmem:[%s7 + $0x100] sm:$0xff]
    %v1202 = vld [vmem:[%s7 + $0x108] sm:$0xff]
    %v1203 = vld [vmem:[%s7 + $0x110] sm:$0xff]
    %v1204 = vld [vmem:[%s7 + $0x118] sm:$0xff]
    %v1205 = vld [vmem:[%s7 + $0x120] sm:$0xff]
    %v1206 = vld [vmem:[%s7 + $0x128] sm:$0xff]
    %v1207 = vld [vmem:[%s7 + $0x130] sm:$0xff]
    %v1208 = vld [vmem:[%s7 + $0x138] sm:$0xff]
    %v1209 = vld [vmem:[%s7 + $0x140] sm:$0xff]
    %v1210 = vld [vmem:[%s7 + $0x148] sm:$0xff]
    %v1211 = vld [vmem:[%s7 + $0x150] sm:$0xff]
    %v1212 = vld [vmem:[%s7 + $0x158] sm:$0xff]
    %v1213 = vld [vmem:[%s7 + $0x160] sm:$0xff]
    %v1214 = vld [vmem:[%s7 + $0x168] sm:$0xff]
    %v1215 = vld [vmem:[%s7 + $0x170] sm:$0xff]
    %v1216 = vld [vmem:[%s7 + $0x178] sm:$0xff]
    %v1217 = vld [vmem:[%s7 + $0x180] sm:$0xff]
    %v1218 = vld [vmem:[%s7 + $0x188] sm:$0xff]
    %v1219 = vld [vmem:[%s7 + $0x190] sm:$0xff]
    %v1220 = vld [vmem:[%s7 + $0x198] sm:$0xff]
    %v1221 = vld [vmem:[%s7 + $0x1a0] sm:$0xff]
    %v1222 = vld [vmem:[%s7 + $0x1a8] sm:$0xff]
    %v1223 = vld [vmem:[%s7 + $0x1b0] sm:$0xff]
    %v1224 = vld [vmem:[%s7 + $0x1b8] sm:$0xff]
    %v1225 = vld [vmem:[%s7 + $0x1c0] sm:$0xff]
    %v1226 = vld [vmem:[%s7 + $0x1c8] sm:$0xff]
    %v1227 = vld [vmem:[%s7 + $0x1d0] sm:$0xff]
    %v1228 = vld [vmem:[%s7 + $0x1d8] sm:$0xff]
    %v1229 = vld [vmem:[%s7 + $0x1e0] sm:$0xff]
    %v1230 = vld [vmem:[%s7 + $0x1e8] sm:$0xff]
    %v1231 = vld [vmem:[%s7 + $0x1f0] sm:$0xff]
    %v1232 = vld [vmem:[%s7 + $0x1f8] sm:$0xff]
    %v1233 = vld [vmem:[%s8] sm:$0xff]
    %v1234 = vld [vmem:[%s8 + $0x8] sm:$0xff]
    %v1235 = vld [vmem:[%s9] sm:$0x1]
    %1236 = vmatprep.subr.mxu0 %v1166
    %1237 = vmatpush1.msra.mxu0 %v1165
    %1238 = vmatprep.subr.mxu0 %v1162
    %1239 = vmatpush1.msra.mxu0 %v1161
    %1240 = vmatprep.subr.mxu0 %v1158
    %1241 = vmatpush1.msra.mxu0 %v1157
    %1242 = vmatprep.subr.mxu0 %v1154
    %1243 = vmatpush1.msra.mxu0 %v1153
    %1244 = vmatprep.subr.mxu0 %v1150
    %1245 = vmatpush1.msra.mxu0 %v1149
    %1246 = vmatprep.subr.mxu0 %v1146
    %1247 = vmatpush1.msra.mxu0 %v1145
    %1248 = vmatprep.subr.mxu0 %v1142
    %1249 = vmatpush1.msra.mxu0 %v1141
    %1250 = vmatprep.subr.mxu0 %v1138
    %1251 = vmatpush1.msra.mxu0 %v1137
    %1252 = vmatprep.subr.mxu0 %v1134
    %1253 = vmatpush1.msra.mxu0 %v1133
    %1254 = vmatprep.subr.mxu0 %v1130
    %1255 = vmatpush1.msra.mxu0 %v1129
    %1256 = vmatprep.subr.mxu0 %v1126
    %1257 = vmatpush1.msra.mxu0 %v1125
    %1258 = vmatprep.subr.mxu0 %v1122
    %1259 = vmatpush1.msra.mxu0 %v1121
    %1260 = vmatprep.subr.mxu0 %v1118
    %1261 = vmatpush1.msra.mxu0 %v1117
    %1262 = vmatprep.subr.mxu0 %v1114
    %1263 = vmatpush1.msra.mxu0 %v1113
    %1264 = vmatprep.subr.mxu0 %v1110
    %1265 = vmatpush1.msra.mxu0 %v1109
    %1266 = vmatprep.subr.mxu0 %v1106
    %1267 = vmatpush1.msra.mxu0 %v1105
    %1268 = vmatprep.subr.mxu0 0.0
    %1269 = vmatpush2.msra.mxu0 0.0
    %1270 = vmatprep.subr.mxu0 0.0
    %1271 = vmatpush2.msra.mxu0 0.0
    %1272 = vmatprep.subr.mxu0 0.0
    %1273 = vmatpush2.msra.mxu0 0.0
    %1274 = vmatprep.subr.mxu0 0.0
    %1275 = vmatpush2.msra.mxu0 0.0
    %1276 = vmatprep.subr.mxu0 0.0
    %1277 = vmatpush2.msra.mxu0 0.0
    %1278 = vmatprep.subr.mxu0 0.0
    %1279 = vmatpush2.msra.mxu0 0.0
    %1280 = vmatprep.subr.mxu0 0.0
    %1281 = vmatpush2.msra.mxu0 0.0
    %1282 = vmatprep.subr.mxu0 0.0
    %1283 = vmatpush2.msra.mxu0 0.0
    %1284 = vmatprep.subr.mxu0 0.0
    %1285 = vmatpush2.msra.mxu0 0.0
    %1286 = vmatprep.subr.mxu0 0.0
    %1287 = vmatpush2.msra.mxu0 0.0
    %1288 = vmatprep.subr.mxu0 0.0
    %1289 = vmatpush2.msra.mxu0 0.0
    %1290 = vmatprep.subr.mxu0 0.0
    %1291 = vmatpush2.msra.mxu0 0.0
    %1292 = vmatprep.subr.mxu0 0.0
    %1293 = vmatpush2.msra.mxu0 0.0
    %1294 = vmatprep.subr.mxu0 0.0
    %1295 = vmatpush2.msra.mxu0 0.0
    %1296 = vmatprep.subr.mxu0 0.0
    %1297 = vmatpush2.msra.mxu0 0.0
    %1298 = vmatprep.subr.mxu0 0.0
    %1299 = vmatpush2.msra.mxu0 0.0
    %1300 = vmatprep.mubr.f32.mxu0 0.0
    %1301 = vmatmul.mubr.f32.gmra.mxu0 %v1103
    %v1302 = vpop.f32.mrf.mxu0
    %v1303 = vadd.f32 0.0, %v1302
    %v1304 = vpop.f32.mrf.mxu0
    %v1305 = vadd.f32 0.0, %v1304
    %1306 = vmatprep.mubr.f32.mxu0 0.0
    %1307 = vmatmul.mubr.f32.gmra.mxu0 %v1104
    %v1308 = vpop.f32.mrf.mxu0
    %v1309 = vadd.f32 0.0, %v1308
    %v1310 = vpop.f32.mrf.mxu0
    %v1311 = vadd.f32 0.0, %v1310
    %1312 = vdwg.mxu0
    %1313 = vmatprep.subr.mxu0 %v1168
    %1314 = vmatpush1.msra.mxu0 %v1167
    %1315 = vmatprep.subr.mxu0 %v1164
    %1316 = vmatpush1.msra.mxu0 %v1163
    %1317 = vmatprep.subr.mxu0 %v1160
    %1318 = vmatpush1.msra.mxu0 %v1159
    %1319 = vmatprep.subr.mxu0 %v1156
    %1320 = vmatpush1.msra.mxu0 %v1155
    %1321 = vmatprep.subr.mxu0 %v1152
    %1322 = vmatpush1.msra.mxu0 %v1151
    %1323 = vmatprep.subr.mxu0 %v1148
    %1324 = vmatpush1.msra.mxu0 %v1147
    %1325 = vmatprep.subr.mxu0 %v1144
    %1326 = vmatpush1.msra.mxu0 %v1143
    %1327 = vmatprep.subr.mxu0 %v1140
    %1328 = vmatpush1.msra.mxu0 %v1139
    %1329 = vmatprep.subr.mxu0 %v1136
    %1330 = vmatpush1.msra.mxu0 %v1135
    %1331 = vmatprep.subr.mxu0 %v1132
    %1332 = vmatpush1.msra.mxu0 %v1131
    %1333 = vmatprep.subr.mxu0 %v1128
    %1334 = vmatpush1.msra.mxu0 %v1127
    %1335 = vmatprep.subr.mxu0 %v1124
    %1336 = vmatpush1.msra.mxu0 %v1123
    %1337 = vmatprep.subr.mxu0 %v1120
    %1338 = vmatpush1.msra.mxu0 %v1119
    %1339 = vmatprep.subr.mxu0 %v1116
    %1340 = vmatpush1.msra.mxu0 %v1115
    %1341 = vmatprep.subr.mxu0 %v1112
    %1342 = vmatpush1.msra.mxu0 %v1111
    %1343 = vmatprep.subr.mxu0 %v1108
    %1344 = vmatpush1.msra.mxu0 %v1107
    %1345 = vmatprep.subr.mxu0 0.0
    %1346 = vmatpush2.msra.mxu0 0.0
    %1347 = vmatprep.subr.mxu0 0.0
    %1348 = vmatpush2.msra.mxu0 0.0
    %1349 = vmatprep.subr.mxu0 0.0
    %1350 = vmatpush2.msra.mxu0 0.0
    %1351 = vmatprep.subr.mxu0 0.0
    %1352 = vmatpush2.msra.mxu0 0.0
    %1353 = vmatprep.subr.mxu0 0.0
    %1354 = vmatpush2.msra.mxu0 0.0
    %1355 = vmatprep.subr.mxu0 0.0
    %1356 = vmatpush2.msra.mxu0 0.0
    %1357 = vmatprep.subr.mxu0 0.0
    %1358 = vmatpush2.msra.mxu0 0.0
    %1359 = vmatprep.subr.mxu0 0.0
    %1360 = vmatpush2.msra.mxu0 0.0
    %1361 = vmatprep.subr.mxu0 0.0
    %1362 = vmatpush2.msra.mxu0 0.0
    %1363 = vmatprep.subr.mxu0 0.0
    %1364 = vmatpush2.msra.mxu0 0.0
    %1365 = vmatprep.subr.mxu0 0.0
    %1366 = vmatpush2.msra.mxu0 0.0
    %1367 = vmatprep.subr.mxu0 0.0
    %1368 = vmatpush2.msra.mxu0 0.0
    %1369 = vmatprep.subr.mxu0 0.0
    %1370 = vmatpush2.msra.mxu0 0.0
    %1371 = vmatprep.subr.mxu0 0.0
    %1372 = vmatpush2.msra.mxu0 0.0
    %1373 = vmatprep.subr.mxu0 0.0
    %1374 = vmatpush2.msra.mxu0 0.0
    %1375 = vmatprep.subr.mxu0 0.0
    %1376 = vmatpush2.msra.mxu0 0.0
    %1377 = vmatprep.mubr.f32.mxu0 0.0
    %1378 = vmatmul.mubr.f32.gmra.mxu0 %v1103
    %v1379 = vpop.f32.mrf.mxu0
    %v1380 = vadd.f32 0.0, %v1379
    %v1381 = vpop.f32.mrf.mxu0
    %v1382 = vadd.f32 0.0, %v1381
    %1383 = vmatprep.mubr.f32.mxu0 0.0
    %1384 = vmatmul.mubr.f32.gmra.mxu0 %v1104
    %v1385 = vpop.f32.mrf.mxu0
    %v1386 = vadd.f32 0.0, %v1385
    %v1387 = vpop.f32.mrf.mxu0
    %v1388 = vadd.f32 0.0, %v1387
    %1389 = vdwg.mxu0
    %1390 = vmatprep.subr.mxu0 0.0
    %1391 = vmatpush1.msra.mxu0 %v1184
    %1392 = vmatprep.subr.mxu0 0.0
    %1393 = vmatpush1.msra.mxu0 %v1183
    %1394 = vmatprep.subr.mxu0 0.0
    %1395 = vmatpush1.msra.mxu0 %v1182
    %1396 = vmatprep.subr.mxu0 0.0
    %1397 = vmatpush1.msra.mxu0 %v1181
    %1398 = vmatprep.subr.mxu0 0.0
    %1399 = vmatpush1.msra.mxu0 %v1180
    %1400 = vmatprep.subr.mxu0 0.0
    %1401 = vmatpush1.msra.mxu0 %v1179
    %1402 = vmatprep.subr.mxu0 0.0
    %1403 = vmatpush1.msra.mxu0 %v1178
    %1404 = vmatprep.subr.mxu0 0.0
    %1405 = vmatpush1.msra.mxu0 %v1177
    %1406 = vmatprep.subr.mxu0 0.0
    %1407 = vmatpush1.msra.mxu0 %v1176
    %1408 = vmatprep.subr.mxu0 0.0
    %1409 = vmatpush1.msra.mxu0 %v1175
    %1410 = vmatprep.subr.mxu0 0.0
    %1411 = vmatpush1.msra.mxu0 %v1174
    %1412 = vmatprep.subr.mxu0 0.0
    %1413 = vmatpush1.msra.mxu0 %v1173
    %1414 = vmatprep.subr.mxu0 0.0
    %1415 = vmatpush1.msra.mxu0 %v1172
    %1416 = vmatprep.subr.mxu0 0.0
    %1417 = vmatpush1.msra.mxu0 %v1171
    %1418 = vmatprep.subr.mxu0 0.0
    %1419 = vmatpush1.msra.mxu0 %v1170
    %1420 = vmatprep.subr.mxu0 0.0
    %1421 = vmatpush1.msra.mxu0 %v1169
    %1422 = vmatprep.subr.mxu0 0.0
    %1423 = vmatpush2.msra.mxu0 %v1200
    %1424 = vmatprep.subr.mxu0 0.0
    %1425 = vmatpush2.msra.mxu0 %v1199
    %1426 = vmatprep.subr.mxu0 0.0
    %1427 = vmatpush2.msra.mxu0 %v1198
    %1428 = vmatprep.subr.mxu0 0.0
    %1429 = vmatpush2.msra.mxu0 %v1197
    %1430 = vmatprep.subr.mxu0 0.0
    %1431 = vmatpush2.msra.mxu0 %v1196
    %1432 = vmatprep.subr.mxu0 0.0
    %1433 = vmatpush2.msra.mxu0 %v1195
    %1434 = vmatprep.subr.mxu0 0.0
    %1435 = vmatpush2.msra.mxu0 %v1194
    %1436 = vmatprep.subr.mxu0 0.0
    %1437 = vmatpush2.msra.mxu0 %v1193
    %1438 = vmatprep.subr.mxu0 0.0
    %1439 = vmatpush2.msra.mxu0 %v1192
    %1440 = vmatprep.subr.mxu0 0.0
    %1441 = vmatpush2.msra.mxu0 %v1191
    %1442 = vmatprep.subr.mxu0 0.0
    %1443 = vmatpush2.msra.mxu0 %v1190
    %1444 = vmatprep.subr.mxu0 0.0
    %1445 = vmatpush2.msra.mxu0 %v1189
    %1446 = vmatprep.subr.mxu0 0.0
    %1447 = vmatpush2.msra.mxu0 %v1188
    %1448 = vmatprep.subr.mxu0 0.0
    %1449 = vmatpush2.msra.mxu0 %v1187
    %1450 = vmatprep.subr.mxu0 0.0
    %1451 = vmatpush2.msra.mxu0 %v1186
    %1452 = vmatprep.subr.mxu0 0.0
    %1453 = vmatpush2.msra.mxu0 %v1185
    %1454 = vmatprep.mubr.f32.mxu0 %v1305
    %1455 = vmatmul.mubr.f32.gmra.mxu0 %v1303
    %v1456 = vpop.f32.mrf.mxu0
    %v1457 = vadd.f32 0.0, %v1456
    %v1458 = vpop.f32.mrf.mxu0
    %1459 = vmatprep.mubr.f32.mxu0 %v1311
    %1460 = vmatmul.mubr.f32.gmra.mxu0 %v1309
    %v1461 = vpop.f32.mrf.mxu0
    %v1462 = vadd.f32 0.0, %v1461
    %v1463 = vpop.f32.mrf.mxu0
    %1464 = vdwg.mxu0
    %1465 = vmatprep.subr.mxu0 0.0
    %1466 = vmatpush1.msra.mxu0 %v1216
    %1467 = vmatprep.subr.mxu0 0.0
    %1468 = vmatpush1.msra.mxu0 %v1215
    %1469 = vmatprep.subr.mxu0 0.0
    %1470 = vmatpush1.msra.mxu0 %v1214
    %1471 = vmatprep.subr.mxu0 0.0
    %1472 = vmatpush1.msra.mxu0 %v1213
    %1473 = vmatprep.subr.mxu0 0.0
    %1474 = vmatpush1.msra.mxu0 %v1212
    %1475 = vmatprep.subr.mxu0 0.0
    %1476 = vmatpush1.msra.mxu0 %v1211
    %1477 = vmatprep.subr.mxu0 0.0
    %1478 = vmatpush1.msra.mxu0 %v1210
    %1479 = vmatprep.subr.mxu0 0.0
    %1480 = vmatpush1.msra.mxu0 %v1209
    %1481 = vmatprep.subr.mxu0 0.0
    %1482 = vmatpush1.msra.mxu0 %v1208
    %1483 = vmatprep.subr.mxu0 0.0
    %1484 = vmatpush1.msra.mxu0 %v1207
    %1485 = vmatprep.subr.mxu0 0.0
    %1486 = vmatpush1.msra.mxu0 %v1206
    %1487 = vmatprep.subr.mxu0 0.0
    %1488 = vmatpush1.msra.mxu0 %v1205
    %1489 = vmatprep.subr.mxu0 0.0
    %1490 = vmatpush1.msra.mxu0 %v1204
    %1491 = vmatprep.subr.mxu0 0.0
    %1492 = vmatpush1.msra.mxu0 %v1203
    %1493 = vmatprep.subr.mxu0 0.0
    %1494 = vmatpush1.msra.mxu0 %v1202
    %1495 = vmatprep.subr.mxu0 0.0
    %1496 = vmatpush1.msra.mxu0 %v1201
    %1497 = vmatprep.subr.mxu0 0.0
    %1498 = vmatpush2.msra.mxu0 %v1232
    %1499 = vmatprep.subr.mxu0 0.0
    %1500 = vmatpush2.msra.mxu0 %v1231
    %1501 = vmatprep.subr.mxu0 0.0
    %1502 = vmatpush2.msra.mxu0 %v1230
    %1503 = vmatprep.subr.mxu0 0.0
    %1504 = vmatpush2.msra.mxu0 %v1229
    %1505 = vmatprep.subr.mxu0 0.0
    %1506 = vmatpush2.msra.mxu0 %v1228
    %1507 = vmatprep.subr.mxu0 0.0
    %1508 = vmatpush2.msra.mxu0 %v1227
    %1509 = vmatprep.subr.mxu0 0.0
    %1510 = vmatpush2.msra.mxu0 %v1226
    %1511 = vmatprep.subr.mxu0 0.0
    %1512 = vmatpush2.msra.mxu0 %v1225
    %1513 = vmatprep.subr.mxu0 0.0
    %1514 = vmatpush2.msra.mxu0 %v1224
    %1515 = vmatprep.subr.mxu0 0.0
    %1516 = vmatpush2.msra.mxu0 %v1223
    %1517 = vmatprep.subr.mxu0 0.0
    %1518 = vmatpush2.msra.mxu0 %v1222
    %1519 = vmatprep.subr.mxu0 0.0
    %1520 = vmatpush2.msra.mxu0 %v1221
    %1521 = vmatprep.subr.mxu0 0.0
    %1522 = vmatpush2.msra.mxu0 %v1220
    %1523 = vmatprep.subr.mxu0 0.0
    %1524 = vmatpush2.msra.mxu0 %v1219
    %1525 = vmatprep.subr.mxu0 0.0
    %1526 = vmatpush2.msra.mxu0 %v1218
    %1527 = vmatprep.subr.mxu0 0.0
    %1528 = vmatpush2.msra.mxu0 %v1217
    %1529 = vmatprep.mubr.f32.mxu0 %v1382
    %1530 = vmatmul.mubr.f32.gmra.mxu0 %v1380
    %v1531 = vpop.f32.mrf.mxu0
    %v1532 = vadd.f32 %v1457, %v1531
    %v1533 = vpop.f32.mrf.mxu0
    %1534 = vmatprep.mubr.f32.mxu0 %v1388
    %1535 = vmatmul.mubr.f32.gmra.mxu0 %v1386
    %v1536 = vpop.f32.mrf.mxu0
    %v1537 = vadd.f32 %v1462, %v1536
    %v1538 = vpop.f32.mrf.mxu0
    %1539 = vdwg.mxu0
    %v1542 = vcombine.high %v1233, %v1233
    %v1543 = vcombine.high %v1234, %v1234
    %1546 = vmatprep.subr.mxu0 0.0
    %1547 = vmatpush1.xpose.msra.mxu0 0.0
    %1548 = vmatprep.subr.mxu0 0.0
    %1549 = vmatpush1.xpose.msra.mxu0 0.0
    %1550 = vmatprep.subr.mxu0 0.0
    %1551 = vmatpush1.xpose.msra.mxu0 0.0
    %1552 = vmatprep.subr.mxu0 0.0
    %1553 = vmatpush1.xpose.msra.mxu0 0.0
    %1554 = vmatprep.subr.mxu0 0.0
    %1555 = vmatpush1.xpose.msra.mxu0 0.0
    %1556 = vmatprep.subr.mxu0 0.0
    %1557 = vmatpush1.xpose.msra.mxu0 0.0
    %1558 = vmatprep.subr.mxu0 0.0
    %1559 = vmatpush1.xpose.msra.mxu0 0.0
    %1560 = vmatprep.subr.mxu0 0.0
    %1561 = vmatpush1.xpose.msra.mxu0 0.0
    %1562 = vmatprep.subr.mxu0 0.0
    %1563 = vmatpush1.xpose.msra.mxu0 0.0
    %1564 = vmatprep.subr.mxu0 0.0
    %1565 = vmatpush1.xpose.msra.mxu0 0.0
    %1566 = vmatprep.subr.mxu0 0.0
    %1567 = vmatpush1.xpose.msra.mxu0 0.0
    %1568 = vmatprep.subr.mxu0 0.0
    %1569 = vmatpush1.xpose.msra.mxu0 0.0
    %1570 = vmatprep.subr.mxu0 0.0
    %1571 = vmatpush1.xpose.msra.mxu0 0.0
    %1572 = vmatprep.subr.mxu0 0.0
    %1573 = vmatpush1.xpose.msra.mxu0 0.0
    %1574 = vmatprep.subr.mxu0 %v1311
    %1575 = vmatpush1.xpose.msra.mxu0 %v1309
    %1576 = vmatprep.subr.mxu0 %v1305
    %1577 = vmatpush1.xpose.msra.mxu0 %v1303
    %1578 = vmatprep.subr.mxu0 0.0
    %1579 = vmatpush2.xpose.msra.mxu0 0.0
    %1580 = vmatprep.subr.mxu0 0.0
    %1581 = vmatpush2.xpose.msra.mxu0 0.0
    %1582 = vmatprep.subr.mxu0 0.0
    %1583 = vmatpush2.xpose.msra.mxu0 0.0
    %1584 = vmatprep.subr.mxu0 0.0
    %1585 = vmatpush2.xpose.msra.mxu0 0.0
    %1586 = vmatprep.subr.mxu0 0.0
    %1587 = vmatpush2.xpose.msra.mxu0 0.0
    %1588 = vmatprep.subr.mxu0 0.0
    %1589 = vmatpush2.xpose.msra.mxu0 0.0
    %1590 = vmatprep.subr.mxu0 0.0
    %1591 = vmatpush2.xpose.msra.mxu0 0.0
    %1592 = vmatprep.subr.mxu0 0.0
    %1593 = vmatpush2.xpose.msra.mxu0 0.0
    %1594 = vmatprep.subr.mxu0 0.0
    %1595 = vmatpush2.xpose.msra.mxu0 0.0
    %1596 = vmatprep.subr.mxu0 0.0
    %1597 = vmatpush2.xpose.msra.mxu0 0.0
    %1598 = vmatprep.subr.mxu0 0.0
    %1599 = vmatpush2.xpose.msra.mxu0 0.0
    %1600 = vmatprep.subr.mxu0 0.0
    %1601 = vmatpush2.xpose.msra.mxu0 0.0
    %1602 = vmatprep.subr.mxu0 0.0
    %1603 = vmatpush2.xpose.msra.mxu0 0.0
    %1604 = vmatprep.subr.mxu0 0.0
    %1605 = vmatpush2.xpose.msra.mxu0 0.0
    %1606 = vmatprep.subr.mxu0 0.0
    %1607 = vmatpush2.xpose.msra.mxu0 0.0
    %1608 = vmatprep.subr.mxu0 0.0
    %1609 = vmatpush2.xpose.msra.mxu0 0.0
    %1610 = vmatprep.mubr.f32.mxu0 %v1542
    %1611 = vmatmul.mubr.f32.gmra.mxu0 %v1233
    %v1612 = vpop.f32.mrf.mxu0
    %v1613 = vadd.f32 0.0, %v1612
    %v1614 = vpop.f32.mrf.mxu0
    %1615 = vdwg.mxu0
    %1616 = vmatprep.subr.mxu0 0.0
    %1617 = vmatpush1.xpose.msra.mxu0 0.0
    %1618 = vmatprep.subr.mxu0 0.0
    %1619 = vmatpush1.xpose.msra.mxu0 0.0
    %1620 = vmatprep.subr.mxu0 0.0
    %1621 = vmatpush1.xpose.msra.mxu0 0.0
    %1622 = vmatprep.subr.mxu0 0.0
    %1623 = vmatpush1.xpose.msra.mxu0 0.0
    %1624 = vmatprep.subr.mxu0 0.0
    %1625 = vmatpush1.xpose.msra.mxu0 0.0
    %1626 = vmatprep.subr.mxu0 0.0
    %1627 = vmatpush1.xpose.msra.mxu0 0.0
    %1628 = vmatprep.subr.mxu0 0.0
    %1629 = vmatpush1.xpose.msra.mxu0 0.0
    %1630 = vmatprep.subr.mxu0 0.0
    %1631 = vmatpush1.xpose.msra.mxu0 0.0
    %1632 = vmatprep.subr.mxu0 0.0
    %1633 = vmatpush1.xpose.msra.mxu0 0.0
    %1634 = vmatprep.subr.mxu0 0.0
    %1635 = vmatpush1.xpose.msra.mxu0 0.0
    %1636 = vmatprep.subr.mxu0 0.0
    %1637 = vmatpush1.xpose.msra.mxu0 0.0
    %1638 = vmatprep.subr.mxu0 0.0
    %1639 = vmatpush1.xpose.msra.mxu0 0.0
    %1640 = vmatprep.subr.mxu0 0.0
    %1641 = vmatpush1.xpose.msra.mxu0 0.0
    %1642 = vmatprep.subr.mxu0 0.0
    %1643 = vmatpush1.xpose.msra.mxu0 0.0
    %1644 = vmatprep.subr.mxu0 %v1388
    %1645 = vmatpush1.xpose.msra.mxu0 %v1386
    %1646 = vmatprep.subr.mxu0 %v1382
    %1647 = vmatpush1.xpose.msra.mxu0 %v1380
    %1648 = vmatprep.subr.mxu0 0.0
    %1649 = vmatpush2.xpose.msra.mxu0 0.0
    %1650 = vmatprep.subr.mxu0 0.0
    %1651 = vmatpush2.xpose.msra.mxu0 0.0
    %1652 = vmatprep.subr.mxu0 0.0
    %1653 = vmatpush2.xpose.msra.mxu0 0.0
    %1654 = vmatprep.subr.mxu0 0.0
    %1655 = vmatpush2.xpose.msra.mxu0 0.0
    %1656 = vmatprep.subr.mxu0 0.0
    %1657 = vmatpush2.xpose.msra.mxu0 0.0
    %1658 = vmatprep.subr.mxu0 0.0
    %1659 = vmatpush2.xpose.msra.mxu0 0.0
    %1660 = vmatprep.subr.mxu0 0.0
    %1661 = vmatpush2.xpose.msra.mxu0 0.0
    %1662 = vmatprep.subr.mxu0 0.0
    %1663 = vmatpush2.xpose.msra.mxu0 0.0
    %1664 = vmatprep.subr.mxu0 0.0
    %1665 = vmatpush2.xpose.msra.mxu0 0.0
    %1666 = vmatprep.subr.mxu0 0.0
    %1667 = vmatpush2.xpose.msra.mxu0 0.0
    %1668 = vmatprep.subr.mxu0 0.0
    %1669 = vmatpush2.xpose.msra.mxu0 0.0
    %1670 = vmatprep.subr.mxu0 0.0
    %1671 = vmatpush2.xpose.msra.mxu0 0.0
    %1672 = vmatprep.subr.mxu0 0.0
    %1673 = vmatpush2.xpose.msra.mxu0 0.0
    %1674 = vmatprep.subr.mxu0 0.0
    %1675 = vmatpush2.xpose.msra.mxu0 0.0
    %1676 = vmatprep.subr.mxu0 0.0
    %1677 = vmatpush2.xpose.msra.mxu0 0.0
    %1678 = vmatprep.subr.mxu0 0.0
    %1679 = vmatpush2.xpose.msra.mxu0 0.0
    %1680 = vmatprep.mubr.f32.mxu0 %v1543
    %1681 = vmatmul.mubr.f32.gmra.mxu0 %v1234
    %v1682 = vpop.f32.mrf.mxu0
    %v1683 = vadd.f32 %v1613, %v1682
    %v1684 = vpop.f32.mrf.mxu0
    %1685 = vdwg.mxu0
    %1687 = vset.pattern.permute.xlu0 0
    %1688 = vperm.xlu0 %1687, %v1532
    %v1689 = vpop.permute.xlu0 %1688
    %1692 = vset.pattern.permute.xlu0 0
    %1693 = vperm.xlu0 %1692, %v1537
    %v1694 = vpop.permute.xlu0 %1693
    %v1696 = vlaneseq
    %v1697 = vshrl.u32 %v1696, 7
    %v1698 = vsub.s32 0, %v1697
    %v1699 = vrot.slane %v1683, %v1698
    %v1700 = vadd.f32 %v1689, %v1699
    %v1701 = vadd.f32 %v1694, %v1699
    %vm1702 = vcmp.gt.f32.partialorder %v1700, 0.0
    %vm1703 = vcmp.gt.f32.partialorder %v1701, 0.0
    %v1704 = vmul.f32 %v1700, 0.2
    %v1705 = vmul.f32 %v1701, 0.2
    %v1706 = vsel %vm1702, %v1700, %v1704
    %v1707 = vsel %vm1703, %v1701, %v1705
    %v1708 = vadd.f32 %v1706, %v40
    %v1709 = vadd.f32 %v1707, %v41
    %v1710 = vsel %vm596, %v1708, -inf
    %1711 = vmax.xlane.f32.xlu0 %v1710
    %v1712 = vpop.xlane.xlu0 %1711
    %v1713 = vsel %vm596, %v1709, -inf
    %1714 = vmax.xlane.f32.xlu0 %v1713
    %v1715 = vpop.xlane.xlu0 %1714
    %v1716 = vsub.f32 %v1708, %v1712
    %v1717 = vsub.f32 %v1709, %v1715
    %v1718 = vmul.f32 %v1716, 1.442695
    %v1719 = vpow.pop %v1718
    %v1720 = vmul.f32 %v1717, 1.442695
    %v1721 = vpow.pop %v1720
    %v1722 = vsel %vm596, %v1719, 0.0
    %1723 = vadd.xlane.f32.xlu0 %v1722
    %v1724 = vpop.xlane.xlu0 %1723
    %v1725 = vsel %vm596, %v1721, 0.0
    %1726 = vadd.xlane.f32.xlu0 %v1725
    %v1727 = vpop.xlane.xlu0 %1726
    %v1728 = vmul.f32 %v1724, 4.0
    %v1729 = vmul.f32 %v1727, 4.0
    %v1730 = vrcp.pop %v1728
    %v1731 = vrcp.pop %v1729
    %v1732 = vmul.f32 %v1719, %v1730
    %v1733 = vmul.f32 %v1721, %v1731
    %1734 = vset.pattern.permute.xlu0 1
    %1735 = vperm.xlu0 %1734, %v1532
    %v1736 = vpop.permute.xlu0 %1735
    %1738 = vset.pattern.permute.xlu0 1
    %1739 = vperm.xlu0 %1738, %v1537
    %v1740 = vpop.permute.xlu0 %1739
    %v1742 = vlaneseq
    %v1743 = vshrl.u32 %v1742, 7
    %v1744 = vsub.s32 1, %v1743
    %v1745 = vrot.slane %v1683, %v1744
    %v1746 = vadd.f32 %v1736, %v1745
    %v1747 = vadd.f32 %v1740, %v1745
    %vm1748 = vcmp.gt.f32.partialorder %v1746, 0.0
    %vm1749 = vcmp.gt.f32.partialorder %v1747, 0.0
    %v1750 = vmul.f32 %v1746, 0.2
    %v1751 = vmul.f32 %v1747, 0.2
    %v1752 = vsel %vm1748, %v1746, %v1750
    %v1753 = vsel %vm1749, %v1747, %v1751
    %v1754 = vadd.f32 %v1752, %v40
    %v1755 = vadd.f32 %v1753, %v41
    %v1756 = vsel %vm596, %v1754, -inf
    %1757 = vmax.xlane.f32.xlu0 %v1756
    %v1758 = vpop.xlane.xlu0 %1757
    %v1759 = vsel %vm596, %v1755, -inf
    %1760 = vmax.xlane.f32.xlu0 %v1759
    %v1761 = vpop.xlane.xlu0 %1760
    %v1762 = vsub.f32 %v1754, %v1758
    %v1763 = vsub.f32 %v1755, %v1761
    %v1764 = vmul.f32 %v1762, 1.442695
    %v1765 = vpow.pop %v1764
    %v1766 = vmul.f32 %v1763, 1.442695
    %v1767 = vpow.pop %v1766
    %v1768 = vsel %vm596, %v1765, 0.0
    %1769 = vadd.xlane.f32.xlu0 %v1768
    %v1770 = vpop.xlane.xlu0 %1769
    %v1771 = vsel %vm596, %v1767, 0.0
    %1772 = vadd.xlane.f32.xlu0 %v1771
    %v1773 = vpop.xlane.xlu0 %1772
    %v1774 = vmul.f32 %v1770, 4.0
    %v1775 = vmul.f32 %v1773, 4.0
    %v1776 = vrcp.pop %v1774
    %v1777 = vrcp.pop %v1775
    %v1778 = vmul.f32 %v1765, %v1776
    %v1779 = vmul.f32 %v1767, %v1777
    %v1781 = vsel %vm596, %v1778, 0
    %v1784 = vsel %vm596, %v1779, 0
    %1786 = vmatprep.subr.mxu0 0.0
    %1787 = vmatpush1.msra.mxu0 0.0
    %1788 = vmatprep.subr.mxu0 0.0
    %1789 = vmatpush1.msra.mxu0 0.0
    %1790 = vmatprep.subr.mxu0 0.0
    %1791 = vmatpush1.msra.mxu0 0.0
    %1792 = vmatprep.subr.mxu0 0.0
    %1793 = vmatpush1.msra.mxu0 0.0
    %1794 = vmatprep.subr.mxu0 0.0
    %1795 = vmatpush1.msra.mxu0 0.0
    %1796 = vmatprep.subr.mxu0 0.0
    %1797 = vmatpush1.msra.mxu0 0.0
    %1798 = vmatprep.subr.mxu0 0.0
    %1799 = vmatpush1.msra.mxu0 0.0
    %1800 = vmatprep.subr.mxu0 0.0
    %1801 = vmatpush1.msra.mxu0 0.0
    %1802 = vmatprep.subr.mxu0 0.0
    %1803 = vmatpush1.msra.mxu0 0.0
    %1804 = vmatprep.subr.mxu0 0.0
    %1805 = vmatpush1.msra.mxu0 0.0
    %1806 = vmatprep.subr.mxu0 0.0
    %1807 = vmatpush1.msra.mxu0 0.0
    %1808 = vmatprep.subr.mxu0 0.0
    %1809 = vmatpush1.msra.mxu0 0.0
    %1810 = vmatprep.subr.mxu0 0.0
    %1811 = vmatpush1.msra.mxu0 0.0
    %1812 = vmatprep.subr.mxu0 0.0
    %1813 = vmatpush1.msra.mxu0 0.0
    %1814 = vmatprep.subr.mxu0 0.0
    %1815 = vmatpush1.msra.mxu0 %v1311
    %1816 = vmatprep.subr.mxu0 0.0
    %1817 = vmatpush1.msra.mxu0 %v1305
    %1818 = vmatprep.subr.mxu0 0.0
    %1819 = vmatpush2.msra.mxu0 0.0
    %1820 = vmatprep.subr.mxu0 0.0
    %1821 = vmatpush2.msra.mxu0 0.0
    %1822 = vmatprep.subr.mxu0 0.0
    %1823 = vmatpush2.msra.mxu0 0.0
    %1824 = vmatprep.subr.mxu0 0.0
    %1825 = vmatpush2.msra.mxu0 0.0
    %1826 = vmatprep.subr.mxu0 0.0
    %1827 = vmatpush2.msra.mxu0 0.0
    %1828 = vmatprep.subr.mxu0 0.0
    %1829 = vmatpush2.msra.mxu0 0.0
    %1830 = vmatprep.subr.mxu0 0.0
    %1831 = vmatpush2.msra.mxu0 0.0
    %1832 = vmatprep.subr.mxu0 0.0
    %1833 = vmatpush2.msra.mxu0 0.0
    %1834 = vmatprep.subr.mxu0 0.0
    %1835 = vmatpush2.msra.mxu0 0.0
    %1836 = vmatprep.subr.mxu0 0.0
    %1837 = vmatpush2.msra.mxu0 0.0
    %1838 = vmatprep.subr.mxu0 0.0
    %1839 = vmatpush2.msra.mxu0 0.0
    %1840 = vmatprep.subr.mxu0 0.0
    %1841 = vmatpush2.msra.mxu0 0.0
    %1842 = vmatprep.subr.mxu0 0.0
    %1843 = vmatpush2.msra.mxu0 0.0
    %1844 = vmatprep.subr.mxu0 0.0
    %1845 = vmatpush2.msra.mxu0 0.0
    %1846 = vmatprep.subr.mxu0 0.0
    %1847 = vmatpush2.msra.mxu0 0.0
    %1848 = vmatprep.subr.mxu0 0.0
    %1849 = vmatpush2.msra.mxu0 0.0
    %1850 = vmatprep.mubr.f32.mxu0 0.0
    %1851 = vmatmul.mubr.f32.gmra.mxu0 %v1781
    %v1852 = vpop.f32.mrf.mxu0
    %v1853 = vadd.f32 0.0, %v1852
    %v1854 = vpop.f32.mrf.mxu0
    %1855 = vmatprep.mubr.f32.mxu0 0.0
    %1856 = vmatmul.mubr.f32.gmra.mxu0 %v1784
    %v1857 = vpop.f32.mrf.mxu0
    %v1858 = vadd.f32 0.0, %v1857
    %v1859 = vpop.f32.mrf.mxu0
    %1860 = vdwg.mxu0
    %v1862 = vsel %vm596, %v1732, 0
    %v1865 = vsel %vm596, %v1733, 0
    %1867 = vmatprep.subr.mxu0 0.0
    %1868 = vmatpush1.msra.mxu0 0.0
    %1869 = vmatprep.subr.mxu0 0.0
    %1870 = vmatpush1.msra.mxu0 0.0
    %1871 = vmatprep.subr.mxu0 0.0
    %1872 = vmatpush1.msra.mxu0 0.0
    %1873 = vmatprep.subr.mxu0 0.0
    %1874 = vmatpush1.msra.mxu0 0.0
    %1875 = vmatprep.subr.mxu0 0.0
    %1876 = vmatpush1.msra.mxu0 0.0
    %1877 = vmatprep.subr.mxu0 0.0
    %1878 = vmatpush1.msra.mxu0 0.0
    %1879 = vmatprep.subr.mxu0 0.0
    %1880 = vmatpush1.msra.mxu0 0.0
    %1881 = vmatprep.subr.mxu0 0.0
    %1882 = vmatpush1.msra.mxu0 0.0
    %1883 = vmatprep.subr.mxu0 0.0
    %1884 = vmatpush1.msra.mxu0 0.0
    %1885 = vmatprep.subr.mxu0 0.0
    %1886 = vmatpush1.msra.mxu0 0.0
    %1887 = vmatprep.subr.mxu0 0.0
    %1888 = vmatpush1.msra.mxu0 0.0
    %1889 = vmatprep.subr.mxu0 0.0
    %1890 = vmatpush1.msra.mxu0 0.0
    %1891 = vmatprep.subr.mxu0 0.0
    %1892 = vmatpush1.msra.mxu0 0.0
    %1893 = vmatprep.subr.mxu0 0.0
    %1894 = vmatpush1.msra.mxu0 0.0
    %1895 = vmatprep.subr.mxu0 0.0
    %1896 = vmatpush1.msra.mxu0 %v1309
    %1897 = vmatprep.subr.mxu0 0.0
    %1898 = vmatpush1.msra.mxu0 %v1303
    %1899 = vmatprep.subr.mxu0 0.0
    %1900 = vmatpush2.msra.mxu0 0.0
    %1901 = vmatprep.subr.mxu0 0.0
    %1902 = vmatpush2.msra.mxu0 0.0
    %1903 = vmatprep.subr.mxu0 0.0
    %1904 = vmatpush2.msra.mxu0 0.0
    %1905 = vmatprep.subr.mxu0 0.0
    %1906 = vmatpush2.msra.mxu0 0.0
    %1907 = vmatprep.subr.mxu0 0.0
    %1908 = vmatpush2.msra.mxu0 0.0
    %1909 = vmatprep.subr.mxu0 0.0
    %1910 = vmatpush2.msra.mxu0 0.0
    %1911 = vmatprep.subr.mxu0 0.0
    %1912 = vmatpush2.msra.mxu0 0.0
    %1913 = vmatprep.subr.mxu0 0.0
    %1914 = vmatpush2.msra.mxu0 0.0
    %1915 = vmatprep.subr.mxu0 0.0
    %1916 = vmatpush2.msra.mxu0 0.0
    %1917 = vmatprep.subr.mxu0 0.0
    %1918 = vmatpush2.msra.mxu0 0.0
    %1919 = vmatprep.subr.mxu0 0.0
    %1920 = vmatpush2.msra.mxu0 0.0
    %1921 = vmatprep.subr.mxu0 0.0
    %1922 = vmatpush2.msra.mxu0 0.0
    %1923 = vmatprep.subr.mxu0 0.0
    %1924 = vmatpush2.msra.mxu0 0.0
    %1925 = vmatprep.subr.mxu0 0.0
    %1926 = vmatpush2.msra.mxu0 0.0
    %1927 = vmatprep.subr.mxu0 0.0
    %1928 = vmatpush2.msra.mxu0 0.0
    %1929 = vmatprep.subr.mxu0 0.0
    %1930 = vmatpush2.msra.mxu0 0.0
    %1931 = vmatprep.mubr.f32.mxu0 0.0
    %1932 = vmatmul.mubr.f32.gmra.mxu0 %v1862
    %v1933 = vpop.f32.mrf.mxu0
    %v1934 = vadd.f32 %v1853, %v1933
    %v1935 = vpop.f32.mrf.mxu0
    %1936 = vmatprep.mubr.f32.mxu0 0.0
    %1937 = vmatmul.mubr.f32.gmra.mxu0 %v1865
    %v1938 = vpop.f32.mrf.mxu0
    %v1939 = vadd.f32 %v1858, %v1938
    %v1940 = vpop.f32.mrf.mxu0
    %1941 = vdwg.mxu0
    %1942 = vset.pattern.permute.xlu0 2
    %1943 = vperm.xlu0 %1942, %v1532
    %v1944 = vpop.permute.xlu0 %1943
    %1946 = vset.pattern.permute.xlu0 2
    %1947 = vperm.xlu0 %1946, %v1537
    %v1948 = vpop.permute.xlu0 %1947
    %v1950 = vlaneseq
    %v1951 = vshrl.u32 %v1950, 7
    %v1952 = vsub.s32 2, %v1951
    %v1953 = vrot.slane %v1683, %v1952
    %v1954 = vadd.f32 %v1944, %v1953
    %v1955 = vadd.f32 %v1948, %v1953
    %vm1956 = vcmp.gt.f32.partialorder %v1954, 0.0
    %vm1957 = vcmp.gt.f32.partialorder %v1955, 0.0
    %v1958 = vmul.f32 %v1954, 0.2
    %v1959 = vmul.f32 %v1955, 0.2
    %v1960 = vsel %vm1956, %v1954, %v1958
    %v1961 = vsel %vm1957, %v1955, %v1959
    %v1962 = vadd.f32 %v1960, %v40
    %v1963 = vadd.f32 %v1961, %v41
    %v1964 = vsel %vm596, %v1962, -inf
    %1965 = vmax.xlane.f32.xlu0 %v1964
    %v1966 = vpop.xlane.xlu0 %1965
    %v1967 = vsel %vm596, %v1963, -inf
    %1968 = vmax.xlane.f32.xlu0 %v1967
    %v1969 = vpop.xlane.xlu0 %1968
    %v1970 = vsub.f32 %v1962, %v1966
    %v1971 = vsub.f32 %v1963, %v1969
    %v1972 = vmul.f32 %v1970, 1.442695
    %v1973 = vpow.pop %v1972
    %v1974 = vmul.f32 %v1971, 1.442695
    %v1975 = vpow.pop %v1974
    %v1976 = vsel %vm596, %v1973, 0.0
    %1977 = vadd.xlane.f32.xlu0 %v1976
    %v1978 = vpop.xlane.xlu0 %1977
    %v1979 = vsel %vm596, %v1975, 0.0
    %1980 = vadd.xlane.f32.xlu0 %v1979
    %v1981 = vpop.xlane.xlu0 %1980
    %v1982 = vmul.f32 %v1978, 4.0
    %v1983 = vmul.f32 %v1981, 4.0
    %v1984 = vrcp.pop %v1982
    %v1985 = vrcp.pop %v1983
    %v1986 = vmul.f32 %v1973, %v1984
    %v1987 = vmul.f32 %v1975, %v1985
    %v1989 = vsel %vm596, %v1986, 0
    %v1992 = vsel %vm596, %v1987, 0
    %1994 = vmatprep.subr.mxu0 0.0
    %1995 = vmatpush1.msra.mxu0 0.0
    %1996 = vmatprep.subr.mxu0 0.0
    %1997 = vmatpush1.msra.mxu0 0.0
    %1998 = vmatprep.subr.mxu0 0.0
    %1999 = vmatpush1.msra.mxu0 0.0
    %2000 = vmatprep.subr.mxu0 0.0
    %2001 = vmatpush1.msra.mxu0 0.0
    %2002 = vmatprep.subr.mxu0 0.0
    %2003 = vmatpush1.msra.mxu0 0.0
    %2004 = vmatprep.subr.mxu0 0.0
    %2005 = vmatpush1.msra.mxu0 0.0
    %2006 = vmatprep.subr.mxu0 0.0
    %2007 = vmatpush1.msra.mxu0 0.0
    %2008 = vmatprep.subr.mxu0 0.0
    %2009 = vmatpush1.msra.mxu0 0.0
    %2010 = vmatprep.subr.mxu0 0.0
    %2011 = vmatpush1.msra.mxu0 0.0
    %2012 = vmatprep.subr.mxu0 0.0
    %2013 = vmatpush1.msra.mxu0 0.0
    %2014 = vmatprep.subr.mxu0 0.0
    %2015 = vmatpush1.msra.mxu0 0.0
    %2016 = vmatprep.subr.mxu0 0.0
    %2017 = vmatpush1.msra.mxu0 0.0
    %2018 = vmatprep.subr.mxu0 0.0
    %2019 = vmatpush1.msra.mxu0 0.0
    %2020 = vmatprep.subr.mxu0 0.0
    %2021 = vmatpush1.msra.mxu0 0.0
    %2022 = vmatprep.subr.mxu0 0.0
    %2023 = vmatpush1.msra.mxu0 %v1386
    %2024 = vmatprep.subr.mxu0 0.0
    %2025 = vmatpush1.msra.mxu0 %v1380
    %2026 = vmatprep.subr.mxu0 0.0
    %2027 = vmatpush2.msra.mxu0 0.0
    %2028 = vmatprep.subr.mxu0 0.0
    %2029 = vmatpush2.msra.mxu0 0.0
    %2030 = vmatprep.subr.mxu0 0.0
    %2031 = vmatpush2.msra.mxu0 0.0
    %2032 = vmatprep.subr.mxu0 0.0
    %2033 = vmatpush2.msra.mxu0 0.0
    %2034 = vmatprep.subr.mxu0 0.0
    %2035 = vmatpush2.msra.mxu0 0.0
    %2036 = vmatprep.subr.mxu0 0.0
    %2037 = vmatpush2.msra.mxu0 0.0
    %2038 = vmatprep.subr.mxu0 0.0
    %2039 = vmatpush2.msra.mxu0 0.0
    %2040 = vmatprep.subr.mxu0 0.0
    %2041 = vmatpush2.msra.mxu0 0.0
    %2042 = vmatprep.subr.mxu0 0.0
    %2043 = vmatpush2.msra.mxu0 0.0
    %2044 = vmatprep.subr.mxu0 0.0
    %2045 = vmatpush2.msra.mxu0 0.0
    %2046 = vmatprep.subr.mxu0 0.0
    %2047 = vmatpush2.msra.mxu0 0.0
    %2048 = vmatprep.subr.mxu0 0.0
    %2049 = vmatpush2.msra.mxu0 0.0
    %2050 = vmatprep.subr.mxu0 0.0
    %2051 = vmatpush2.msra.mxu0 0.0
    %2052 = vmatprep.subr.mxu0 0.0
    %2053 = vmatpush2.msra.mxu0 0.0
    %2054 = vmatprep.subr.mxu0 0.0
    %2055 = vmatpush2.msra.mxu0 0.0
    %2056 = vmatprep.subr.mxu0 0.0
    %2057 = vmatpush2.msra.mxu0 0.0
    %2058 = vmatprep.mubr.f32.mxu0 0.0
    %2059 = vmatmul.mubr.f32.gmra.mxu0 %v1989
    %v2060 = vpop.f32.mrf.mxu0
    %v2061 = vadd.f32 0.0, %v2060
    %v2062 = vpop.f32.mrf.mxu0
    %2063 = vmatprep.mubr.f32.mxu0 0.0
    %2064 = vmatmul.mubr.f32.gmra.mxu0 %v1992
    %v2065 = vpop.f32.mrf.mxu0
    %v2066 = vadd.f32 0.0, %v2065
    %v2067 = vpop.f32.mrf.mxu0
    %2068 = vdwg.mxu0
    %v2069 = vadd.f32 %v1934, %v2061
    %v2070 = vadd.f32 %v1939, %v2066
    %2071 = vset.pattern.permute.xlu0 3
    %2072 = vperm.xlu0 %2071, %v1532
    %v2073 = vpop.permute.xlu0 %2072
    %2075 = vset.pattern.permute.xlu0 3
    %2076 = vperm.xlu0 %2075, %v1537
    %v2077 = vpop.permute.xlu0 %2076
    %v2079 = vlaneseq
    %v2080 = vshrl.u32 %v2079, 7
    %v2081 = vsub.s32 3, %v2080
    %v2082 = vrot.slane %v1683, %v2081
    %v2083 = vadd.f32 %v2073, %v2082
    %v2084 = vadd.f32 %v2077, %v2082
    %vm2085 = vcmp.gt.f32.partialorder %v2083, 0.0
    %vm2086 = vcmp.gt.f32.partialorder %v2084, 0.0
    %v2087 = vmul.f32 %v2083, 0.2
    %v2088 = vmul.f32 %v2084, 0.2
    %v2089 = vsel %vm2085, %v2083, %v2087
    %v2090 = vsel %vm2086, %v2084, %v2088
    %v2091 = vadd.f32 %v2089, %v40
    %v2092 = vadd.f32 %v2090, %v41
    %v2093 = vsel %vm596, %v2091, -inf
    %2094 = vmax.xlane.f32.xlu0 %v2093
    %v2095 = vpop.xlane.xlu0 %2094
    %v2096 = vsel %vm596, %v2092, -inf
    %2097 = vmax.xlane.f32.xlu0 %v2096
    %v2098 = vpop.xlane.xlu0 %2097
    %v2099 = vsub.f32 %v2091, %v2095
    %v2100 = vsub.f32 %v2092, %v2098
    %v2101 = vmul.f32 %v2099, 1.442695
    %v2102 = vpow.pop %v2101
    %v2103 = vmul.f32 %v2100, 1.442695
    %v2104 = vpow.pop %v2103
    %v2105 = vsel %vm596, %v2102, 0.0
    %2106 = vadd.xlane.f32.xlu0 %v2105
    %v2107 = vpop.xlane.xlu0 %2106
    %v2108 = vsel %vm596, %v2104, 0.0
    %2109 = vadd.xlane.f32.xlu0 %v2108
    %v2110 = vpop.xlane.xlu0 %2109
    %v2111 = vmul.f32 %v2107, 4.0
    %v2112 = vmul.f32 %v2110, 4.0
    %v2113 = vrcp.pop %v2111
    %v2114 = vrcp.pop %v2112
    %v2115 = vmul.f32 %v2102, %v2113
    %v2116 = vmul.f32 %v2104, %v2114
    %v2118 = vsel %vm596, %v2115, 0
    %v2121 = vsel %vm596, %v2116, 0
    %2123 = vmatprep.subr.mxu0 0.0
    %2124 = vmatpush1.msra.mxu0 0.0
    %2125 = vmatprep.subr.mxu0 0.0
    %2126 = vmatpush1.msra.mxu0 0.0
    %2127 = vmatprep.subr.mxu0 0.0
    %2128 = vmatpush1.msra.mxu0 0.0
    %2129 = vmatprep.subr.mxu0 0.0
    %2130 = vmatpush1.msra.mxu0 0.0
    %2131 = vmatprep.subr.mxu0 0.0
    %2132 = vmatpush1.msra.mxu0 0.0
    %2133 = vmatprep.subr.mxu0 0.0
    %2134 = vmatpush1.msra.mxu0 0.0
    %2135 = vmatprep.subr.mxu0 0.0
    %2136 = vmatpush1.msra.mxu0 0.0
    %2137 = vmatprep.subr.mxu0 0.0
    %2138 = vmatpush1.msra.mxu0 0.0
    %2139 = vmatprep.subr.mxu0 0.0
    %2140 = vmatpush1.msra.mxu0 0.0
    %2141 = vmatprep.subr.mxu0 0.0
    %2142 = vmatpush1.msra.mxu0 0.0
    %2143 = vmatprep.subr.mxu0 0.0
    %2144 = vmatpush1.msra.mxu0 0.0
    %2145 = vmatprep.subr.mxu0 0.0
    %2146 = vmatpush1.msra.mxu0 0.0
    %2147 = vmatprep.subr.mxu0 0.0
    %2148 = vmatpush1.msra.mxu0 0.0
    %2149 = vmatprep.subr.mxu0 0.0
    %2150 = vmatpush1.msra.mxu0 0.0
    %2151 = vmatprep.subr.mxu0 0.0
    %2152 = vmatpush1.msra.mxu0 %v1388
    %2153 = vmatprep.subr.mxu0 0.0
    %2154 = vmatpush1.msra.mxu0 %v1382
    %2155 = vmatprep.subr.mxu0 0.0
    %2156 = vmatpush2.msra.mxu0 0.0
    %2157 = vmatprep.subr.mxu0 0.0
    %2158 = vmatpush2.msra.mxu0 0.0
    %2159 = vmatprep.subr.mxu0 0.0
    %2160 = vmatpush2.msra.mxu0 0.0
    %2161 = vmatprep.subr.mxu0 0.0
    %2162 = vmatpush2.msra.mxu0 0.0
    %2163 = vmatprep.subr.mxu0 0.0
    %2164 = vmatpush2.msra.mxu0 0.0
    %2165 = vmatprep.subr.mxu0 0.0
    %2166 = vmatpush2.msra.mxu0 0.0
    %2167 = vmatprep.subr.mxu0 0.0
    %2168 = vmatpush2.msra.mxu0 0.0
    %2169 = vmatprep.subr.mxu0 0.0
    %2170 = vmatpush2.msra.mxu0 0.0
    %2171 = vmatprep.subr.mxu0 0.0
    %2172 = vmatpush2.msra.mxu0 0.0
    %2173 = vmatprep.subr.mxu0 0.0
    %2174 = vmatpush2.msra.mxu0 0.0
    %2175 = vmatprep.subr.mxu0 0.0
    %2176 = vmatpush2.msra.mxu0 0.0
    %2177 = vmatprep.subr.mxu0 0.0
    %2178 = vmatpush2.msra.mxu0 0.0
    %2179 = vmatprep.subr.mxu0 0.0
    %2180 = vmatpush2.msra.mxu0 0.0
    %2181 = vmatprep.subr.mxu0 0.0
    %2182 = vmatpush2.msra.mxu0 0.0
    %2183 = vmatprep.subr.mxu0 0.0
    %2184 = vmatpush2.msra.mxu0 0.0
    %2185 = vmatprep.subr.mxu0 0.0
    %2186 = vmatpush2.msra.mxu0 0.0
    %2187 = vmatprep.mubr.f32.mxu0 0.0
    %2188 = vmatmul.mubr.f32.gmra.mxu0 %v2118
    %v2189 = vpop.f32.mrf.mxu0
    %v2190 = vadd.f32 0.0, %v2189
    %v2191 = vpop.f32.mrf.mxu0
    %2192 = vmatprep.mubr.f32.mxu0 0.0
    %2193 = vmatmul.mubr.f32.gmra.mxu0 %v2121
    %v2194 = vpop.f32.mrf.mxu0
    %v2195 = vadd.f32 0.0, %v2194
    %v2196 = vpop.f32.mrf.mxu0
    %2197 = vdwg.mxu0
    %v2198 = vadd.f32 %v2069, %v2190
    %v2199 = vadd.f32 %v2070, %v2195
    %v2201 = vlaneseq
    %v2202 = vshrl.u32 %v2201, 7
    %v2203 = vsub.s32 0, %v2202
    %v2204 = vrot.slane %v1235, %v2203
    %v2206 = vadd.f32 %v2198, %v2204
    %v2207 = vadd.f32 %v2199, %v2204
    %2208 = vst [vmem:[#allocation2] sm:$0xff] %v2206
    %2209 = vst [vmem:[#allocation2 + $0x8] sm:$0xff] %v2207
    // Predicated region
    $region42: #{tpu_custom_call.1} parent=1 // pred_check
      _
    $region43: #{tpu_custom_call.1} parent=1 // pred_check_branch
      %2211 = sbr.rel (0) target = $region45
    $region44: #{tpu_custom_call.1} parent=1 // pred_region
      %s2213 = ssub.s32 256, 256
      %2214 = vsyncadd [#allocation3], %s2213
      %s2215 = sshll.u32 [#allocation2], 4
      %s2216 = int_to_ptr.vmem [resolvable:$true] %s2215
      %2221 = dma.vmem_to_hbm [thread:$0]  %s2216, 256, %s10, [#allocation3], 128, 128, 8
    $region45: #{tpu_custom_call.1} parent=1 // pred_fallthru
      _
    // Predicated region
    $region46: #{tpu_custom_call.1} parent=1 // pred_check
      _
    $region47: #{tpu_custom_call.1} parent=1 // pred_check_branch
      %2223 = sbr.rel (0) target = $region49
    $region48: #{tpu_custom_call.1} parent=1 // pred_region
      %2224 = dma.done [#allocation3], 256
    $region49: #{tpu_custom_call.1} parent=1 // pred_fallthru
      _
    %2225 = vsyncpa [#allocation3], 1

</llo_original>
